<compile_context>
chip_gen: v5e
topology: v5e:2x2
jax: 0.10.0
libtpu: 0.0.40
codegen_flags: <defaults>
</compile_context>

<pallas_src>
import functools

import jax
import jax.numpy as jnp
from jax import lax
from jax.experimental import pallas as pl
from jax.experimental.pallas import tpu as pltpu

VOCAB = 2 ** 15
HIDDEN = 96
NUM_CLASSES = 100

HP = 128   # padded hidden (lane-dense)
CP = 128   # padded classes (lane-dense)


def _round_up(x, m):
    return ((x + m - 1) // m) * m


# ----------------------------------------------------------------------------
# Pallas kernel: per-tile input projection + serial GRU recurrence + last-select
# + classifier finalize.
# ----------------------------------------------------------------------------
def gru_kernel(emb_ref,     # [T_TILE*B_TILE, HP]    bf16/f32  embedding tile (row = t_local*B_TILE + b_local)
               le_ref,      # [B_TILE, 1]            i32       last_elements column
               wih_ref,     # [HP, 3*HP]             bf16/f32  packed input->hidden weights (r,z,n)
               bin_ref,     # [1, 3*HP]              f32       folded biases (b_ir+b_hr, b_iz+b_hz, b_in)
               whh_ref,     # [HP, 3*HP]             bf16/f32  packed hidden->hidden weights (r,z,n)
               bhn_ref,     # [1, HP]                f32       b_hn (only bias that can't be folded)
               wcls_ref,    # [HP, CP]               bf16/f32  classifier weights
               bcls_ref,    # [1, CP]                f32       classifier bias
               logits_ref,  # [B_TILE, CP]           f32       (out)
               lastf_ref,   # [B_TILE, HP]           f32       (out)
               h_sc,        # [B_TILE, HP]           f32       scratch: carried hidden state
               lf_sc,       # [B_TILE, HP]           f32       scratch: carried last_feature
               xg_sc,       # [T_TILE*B_TILE, 3*HP]  f32       scratch: per-tile input projections
               *, t_tile, hp, unroll):
    ti = pl.program_id(1)
    n_t = pl.num_programs(1)
    b_tile = h_sc.shape[0]
    mxu_dtype = whh_ref.dtype

    @pl.when(ti == 0)
    def _init():
        h_sc[...] = jnp.zeros_like(h_sc)
        lf_sc[...] = jnp.zeros_like(lf_sc)

    # ---- per-tile input projection (pure-throughput MXU work, one weight push for
    #      all T_TILE steps): xg = emb @ W_ih_packed + folded biases ----
    xg_sc[...] = (jnp.dot(emb_ref[...], wih_ref[...],
                          preferred_element_type=jnp.float32)
                  + bin_ref[...])

    # Hoisted loads (once per time tile, not per step).
    whh = whh_ref[...]            # [HP, 3*HP]
    b_hn = bhn_ref[...]           # [1, HP]  -> broadcast by the add, no explicit tile bcast
    le = le_ref[...]              # [B_TILE, 1] int32
    t_base = ti * t_tile

    def step(i, carry):
        h, lf = carry
        row0 = pl.multiple_of(i * b_tile, b_tile)
        xg = xg_sc[pl.ds(row0, b_tile), :]                              # [B_TILE, 3*HP] f32
        # Single fused hidden->hidden matmul for all three gates (bf16 in, f32 acc).
        hg = jnp.dot(h.astype(mxu_dtype), whh,
                     preferred_element_type=jnp.float32)                # [B_TILE, 3*HP]
        r = jax.nn.sigmoid(xg[:, 0:hp] + hg[:, 0:hp])
        z = jax.nn.sigmoid(xg[:, hp:2 * hp] + hg[:, hp:2 * hp])
        n = jnp.tanh(xg[:, 2 * hp:3 * hp] + r * (hg[:, 2 * hp:3 * hp] + b_hn))
        h_new = (1.0 - z) * n + z * h
        # Capture hidden state at the per-row "last element" timestep.
        lf = jnp.where(le == (t_base + i), h_new, lf)
        return h_new, lf

    h, lf = lax.fori_loop(0, t_tile, step, (h_sc[...], lf_sc[...]), unroll=unroll)
    h_sc[...] = h
    lf_sc[...] = lf

    @pl.when(ti == n_t - 1)
    def _finalize():
        lastf_ref[...] = lf
        logits_ref[...] = (
            jnp.dot(lf.astype(mxu_dtype), wcls_ref[...],
                    preferred_element_type=jnp.float32)
            + bcls_ref[...])


# ----------------------------------------------------------------------------
# Wrapper: pack/pad parameters, block the embedding gather, call the kernel
# ----------------------------------------------------------------------------
def network_forward(ids, last_elements, params, return_last_feature=False,
                    t_tile=32, b_tile=128, use_bf16=True, min_batch_tiles=1):
    """ids: [B, T] int32, last_elements: [B] int32.

    t_tile=32 keeps the per-tile VMEM footprint (~15 MiB at b_tile=128) inside the
    32 MiB scoped default on all generations (incl. v7x).  On v6e with large batches
    b_tile=256 (with t_tile=16) fills the 256-row MXU.  On v7x pass min_batch_tiles=2
    so both TensorCores receive a batch tile.
    """
    B, T = ids.shape
    H, C, Hp, Cp = HIDDEN, NUM_CLASSES, HP, CP
    w_dtype = jnp.bfloat16 if use_bf16 else jnp.float32

    # ---- pack + zero-pad weights (lane-dense 128-wide gate blocks) ----
    w_ih, w_hh = params["w_ih"], params["w_hh"]        # [3, H, H]
    b_ih, b_hh = params["b_ih"], params["b_hh"]        # [3, 1, H]

    def pack_gate_cols(w3):  # [3, H, H] -> [H, 3*Hp] (each gate's columns padded to Hp)
        return jnp.concatenate(
            [jnp.pad(w3[g], ((0, 0), (0, Hp - H))) for g in range(3)], axis=1)

    w_ih_pk = jnp.pad(pack_gate_cols(w_ih), ((0, Hp - H), (0, 0))).astype(w_dtype)  # [Hp, 3*Hp]
    w_hh_pk = jnp.pad(pack_gate_cols(w_hh), ((0, Hp - H), (0, 0))).astype(w_dtype)  # [Hp, 3*Hp]

    # Fold b_ir+b_hr and b_iz+b_hz into the input-projection bias; b_hn stays separate.
    b_in_pk = jnp.concatenate([
        jnp.pad(b_ih[0] + b_hh[0], ((0, 0), (0, Hp - H))),
        jnp.pad(b_ih[1] + b_hh[1], ((0, 0), (0, Hp - H))),
        jnp.pad(b_ih[2], ((0, 0), (0, Hp - H)))], axis=1).astype(jnp.float32)        # [1, 3*Hp]
    b_hn = jnp.pad(b_hh[2], ((0, 0), (0, Hp - H))).astype(jnp.float32)               # [1, Hp]

    w_cls = jnp.pad(params["w_cls"], ((0, Hp - H), (0, Cp - C))).astype(w_dtype)     # [Hp, Cp]
    b_cls = jnp.pad(params["b_cls"], ((0, 0), (0, Cp - C))).astype(jnp.float32)      # [1, Cp]

    emb_tbl = jnp.pad(params["embedding"], ((0, 0), (0, Hp - H))).astype(w_dtype)    # [V, Hp]

    # ---- tile sizes: batch (sublanes) and time ----
    B_TILE = min(b_tile, _round_up(B, 8))
    # v7x (2 TCs/chip): with min_batch_tiles=2 the "parallel" batch axis feeds both cores.
    while _round_up(B, 8) // B_TILE < min_batch_tiles and B_TILE > 8:
        B_TILE = max(8, _round_up(B_TILE // 2, 8))
    B_pad = _round_up(B, B_TILE)
    T_TILE = min(t_tile, T)
    T_pad = _round_up(T, T_TILE)
    nB, nT = B_pad // B_TILE, T_pad // T_TILE

    ids_p = jnp.pad(ids.astype(jnp.int32), ((0, B_pad - B), (0, T_pad - T)))
    le_p = jnp.pad(last_elements.astype(jnp.int32), (0, B_pad - B))[:, None]   # [B_pad, 1]

    # Gather the embedding directly into the blocked layout the kernel consumes:
    # [nB, nT, T_TILE*B_TILE, Hp] with row index = t_local * B_TILE + b_local.
    # (Pre-blocking in XLA means the kernel does its batched projection matmul with
    #  no in-kernel reshapes, and each streamed block is contiguous in HBM.)
    ids_blk = (ids_p.reshape(nB, B_TILE, nT, T_TILE)
                    .transpose(0, 2, 3, 1)                         # [nB, nT, T_TILE, B_TILE]
                    .reshape(nB, nT, T_TILE * B_TILE))
    emb_blk = jnp.take(emb_tbl, ids_blk, axis=0)                   # [nB, nT, T*B, Hp] w_dtype

    grid = (nB, nT)
    kernel = functools.partial(gru_kernel, t_tile=T_TILE, hp=Hp,
                               unroll=min(8, T_TILE))

    logits_p, lastf_p = pl.pallas_call(
        kernel,
        out_shape=(jax.ShapeDtypeStruct((B_pad, Cp), jnp.float32),
                   jax.ShapeDtypeStruct((B_pad, Hp), jnp.float32)),
        grid_spec=pltpu.PrefetchScalarGridSpec(
            num_scalar_prefetch=0,
            grid=grid,
            in_specs=[
                # streamed embedding tile (only HBM stream that scales with T)
                pl.BlockSpec((None, None, T_TILE * B_TILE, Hp),
                             lambda bi, ti: (bi, ti, 0, 0)),
                pl.BlockSpec((B_TILE, 1), lambda bi, ti: (bi, 0)),     # last_elements
                pl.BlockSpec((Hp, 3 * Hp), lambda bi, ti: (0, 0)),     # W_ih packed
                pl.BlockSpec((1, 3 * Hp), lambda bi, ti: (0, 0)),      # folded input bias
                pl.BlockSpec((Hp, 3 * Hp), lambda bi, ti: (0, 0)),     # W_hh packed
                pl.BlockSpec((1, Hp), lambda bi, ti: (0, 0)),          # b_hn
                pl.BlockSpec((Hp, Cp), lambda bi, ti: (0, 0)),         # W_cls
                pl.BlockSpec((1, Cp), lambda bi, ti: (0, 0)),          # b_cls
            ],
            out_specs=(pl.BlockSpec((B_TILE, Cp), lambda bi, ti: (bi, 0)),
                       pl.BlockSpec((B_TILE, Hp), lambda bi, ti: (bi, 0))),
            scratch_shapes=[pltpu.VMEM((B_TILE, Hp), jnp.float32),              # h carry
                            pltpu.VMEM((B_TILE, Hp), jnp.float32),              # last_feature carry
                            pltpu.VMEM((T_TILE * B_TILE, 3 * Hp), jnp.float32)],  # xg
        ),
        compiler_params=pltpu.CompilerParams(
            dimension_semantics=("parallel", "arbitrary"),
            vmem_limit_bytes=32 * 1024 * 1024,
        ),
    )(emb_blk, le_p, w_ih_pk, b_in_pk, w_hh_pk, b_hn, w_cls, b_cls)

    logits = logits_p[:B, :C]
    last_feat = lastf_p[:B, :H]
    if not return_last_feature:
        return logits
    return logits, last_feat


# ----------------------------------------------------------------------------
# Pure-JAX reference (same parameterization) for a correctness check
# ----------------------------------------------------------------------------
def network_ref(ids, last_elements, params):
    emb = jnp.take(params["embedding"], ids, axis=0)      # [B, T, H]
    emb_tm = jnp.transpose(emb, (1, 0, 2))                # [T, B, H]
    w_ih, w_hh = params["w_ih"], params["w_hh"]
    b_ih, b_hh = params["b_ih"], params["b_hh"]

    def step(h, x):
        r = jax.nn.sigmoid(x @ w_ih[0] + b_ih[0] + h @ w_hh[0] + b_hh[0])
        z = jax.nn.sigmoid(x @ w_ih[1] + b_ih[1] + h @ w_hh[1] + b_hh[1])
        n = jnp.tanh(x @ w_ih[2] + b_ih[2] + r * (h @ w_hh[2] + b_hh[2]))
        h = (1.0 - z) * n + z * h
        return h, h

    B = ids.shape[0]
    h0 = jnp.zeros((B, HIDDEN), jnp.float32)
    _, hs = lax.scan(step, h0, emb_tm)                    # [T, B, H]
    last_feat = hs[last_elements, jnp.arange(B)]          # [B, H]
    logits = last_feat @ params["w_cls"] + params["b_cls"][0]
    return logits, last_feat


def init_params(key):
    k_emb, k_wih, k_whh, k_bih, k_bhh, k_wc, k_bc = jax.random.split(key, 7)
    H, C = HIDDEN, NUM_CLASSES
    bound = 1.0 / (H ** 0.5)
    params = {
        # nn.Embedding default init: N(0, 1)
        "embedding": jax.random.normal(k_emb, (VOCAB, H), jnp.float32),
        # GRU weights, uniform(-1/sqrt(H), 1/sqrt(H)); stacked per-gate (r, z, n),
        # stored already transposed so the math is x @ W.
        "w_ih": jax.random.uniform(k_wih, (3, H, H), jnp.float32, -bound, bound),
        "w_hh": jax.random.uniform(k_whh, (3, H, H), jnp.float32, -bound, bound),
        "b_ih": jax.random.uniform(k_bih, (3, 1, H), jnp.float32, -bound, bound),
        "b_hh": jax.random.uniform(k_bhh, (3, 1, H), jnp.float32, -bound, bound),
        # Linear(96 -> 100), uniform(-1/sqrt(96), 1/sqrt(96)), stored as [H, C]
        "w_cls": jax.random.uniform(k_wc, (H, C), jnp.float32, -bound, bound),
        "b_cls": jax.random.uniform(k_bc, (1, C), jnp.float32, -bound, bound),
    }
    return params


if __name__ == "__main__":
    key = jax.random.PRNGKey(0)
    k_params, k_ids, k_last = jax.random.split(key, 3)

    B, T = 2, 16
    params = init_params(k_params)
    ids = jax.random.randint(k_ids, (B, T), 0, VOCAB, dtype=jnp.int32)
    last_elements = jax.random.randint(k_last, (B,), 0, T, dtype=jnp.int32)

    ref_logits, ref_last = network_ref(ids, last_elements, params)

    # t_tile=8 so the example exercises the multi-tile time grid (T=16 -> 2 tiles) and
    # the VMEM-carried hidden state.  f32 path checked tight, bf16 MXU path checked loose.
    for use_bf16, tol in ((False, 5e-3), (True, 5e-2)):
        fwd = jax.jit(functools.partial(network_forward, return_last_feature=True,
                                        t_tile=8, use_bf16=use_bf16))
        logits, last_feat = fwd(ids, last_elements, params)
        jax.block_until_ready((logits, last_feat))
        assert logits.shape == (B, NUM_CLASSES) and last_feat.shape == (B, HIDDEN)
        assert jnp.allclose(logits, ref_logits, rtol=tol, atol=tol), \
            f"logits mismatch (bf16={use_bf16})"
        assert jnp.allclose(last_feat, ref_last, rtol=tol, atol=tol), \
            f"last_feature mismatch (bf16={use_bf16})"

    print("KERNEL_OK")
</pallas_src>

<mosaic_0001>
module attributes {stable_mosaic.version = 11 : i64} {
  func.func @gru_kernel(%arg0: i32, %arg1: i32, %arg2: memref<1x1x64x128xf32, #tpu.memory_space<vmem>>, %arg3: memref<8x1xi32, #tpu.memory_space<vmem>>, %arg4: memref<128x384xf32, #tpu.memory_space<vmem>>, %arg5: memref<1x384xf32, #tpu.memory_space<vmem>>, %arg6: memref<128x384xf32, #tpu.memory_space<vmem>>, %arg7: memref<1x128xf32, #tpu.memory_space<vmem>>, %arg8: memref<128x128xf32, #tpu.memory_space<vmem>>, %arg9: memref<1x128xf32, #tpu.memory_space<vmem>>, %arg10: memref<8x128xf32, #tpu.memory_space<vmem>>, %arg11: memref<8x128xf32, #tpu.memory_space<vmem>>, %arg12: memref<8x128xf32, #tpu.memory_space<vmem>>, %arg13: memref<8x128xf32, #tpu.memory_space<vmem>>, %arg14: memref<64x384xf32, #tpu.memory_space<vmem>>) attributes {dimension_semantics = [#tpu.dimension_semantics<parallel>, #tpu.dimension_semantics<arbitrary>], iteration_bounds = array<i64: 1, 2>, scalar_prefetch = 0 : i64, scratch_operands = 3 : i64, tpu.core_type = #tpu.core_type<tc>, window_params = [{transform_indices = @transform_0, window_bounds = array<i64: 1, 1, 64, 128>}, {transform_indices = @transform_1, window_bounds = array<i64: 8, 1>}, {pipeline_mode = #tpu.pipeline_mode<synchronous>, transform_indices = @transform_2, window_bounds = array<i64: 128, 384>}, {pipeline_mode = #tpu.pipeline_mode<synchronous>, transform_indices = @transform_3, window_bounds = array<i64: 1, 384>}, {pipeline_mode = #tpu.pipeline_mode<synchronous>, transform_indices = @transform_4, window_bounds = array<i64: 128, 384>}, {pipeline_mode = #tpu.pipeline_mode<synchronous>, transform_indices = @transform_5, window_bounds = array<i64: 1, 128>}, {pipeline_mode = #tpu.pipeline_mode<synchronous>, transform_indices = @transform_6, window_bounds = array<i64: 128, 128>}, {pipeline_mode = #tpu.pipeline_mode<synchronous>, transform_indices = @transform_7, window_bounds = array<i64: 1, 128>}, {transform_indices = @transform_8, window_bounds = array<i64: 8, 128>}, {transform_indices = @transform_9, window_bounds = array<i64: 8, 128>}]} {
    %c0_i32 = arith.constant 0 : i32
    %0 = arith.cmpi eq, %arg1, %c0_i32 : i32
    %1 = arith.extui %0 : i1 to i32
    %c0_i32_0 = arith.constant 0 : i32
    %2 = arith.cmpi ne, %1, %c0_i32_0 : i32
    scf.if %2 {
      %cst_76 = arith.constant 0.000000e+00 : f32
      %334 = vector.broadcast %cst_76 : f32 to vector<8x128xf32>
      %c0_77 = arith.constant 0 : index
      %c0_78 = arith.constant 0 : index
      %335 = vector.load %arg12[%c0_77, %c0_78] : memref<8x128xf32, #tpu.memory_space<vmem>>, vector<8x128xf32>
      tpu.vector_store %arg12[%c0_77, %c0_78], %334 {strides = array<i32>} : memref<8x128xf32, #tpu.memory_space<vmem>>, vector<8x128xf32>,
      %cst_79 = arith.constant 0.000000e+00 : f32
      %336 = vector.broadcast %cst_79 : f32 to vector<8x128xf32>
      %c0_80 = arith.constant 0 : index
      %c0_81 = arith.constant 0 : index
      %337 = vector.load %arg13[%c0_80, %c0_81] : memref<8x128xf32, #tpu.memory_space<vmem>>, vector<8x128xf32>
      tpu.vector_store %arg13[%c0_80, %c0_81], %336 {strides = array<i32>} : memref<8x128xf32, #tpu.memory_space<vmem>>, vector<8x128xf32>,
    } else {
    }
    %c0 = arith.constant 0 : index
    %c0_1 = arith.constant 0 : index
    %c0_2 = arith.constant 0 : index
    %c0_3 = arith.constant 0 : index
    %3 = vector.load %arg2[%c0, %c0_1, %c0_2, %c0_3] : memref<1x1x64x128xf32, #tpu.memory_space<vmem>>, vector<1x1x64x128xf32>
    %4 = vector.shape_cast %3 : vector<1x1x64x128xf32> to vector<64x128xf32>
    %c0_4 = arith.constant 0 : index
    %c0_5 = arith.constant 0 : index
    %5 = vector.load %arg4[%c0_4, %c0_5] : memref<128x384xf32, #tpu.memory_space<vmem>>, vector<128x384xf32>
    %cst = arith.constant dense<0.000000e+00> : vector<64x384xf32>
    %6 = tpu.matmul %4, %5, %cst {dimension_numbers = #tpu.dot_dimension_numbers<[1], [0], [0], [1], [0, 0, 1, 1], [], []>} : vector<64x128xf32>, vector<128x384xf32>, vector<64x384xf32> -> vector<64x384xf32>
    %c0_6 = arith.constant 0 : index
    %c0_7 = arith.constant 0 : index
    %7 = vector.load %arg5[%c0_6, %c0_7] : memref<1x384xf32, #tpu.memory_space<vmem>>, vector<1x384xf32>
    %8 = vector.broadcast %7 : vector<1x384xf32> to vector<64x384xf32>
    %9 = arith.addf %6, %8 : vector<64x384xf32>
    %c0_8 = arith.constant 0 : index
    %c0_9 = arith.constant 0 : index
    %10 = vector.load %arg14[%c0_8, %c0_9] : memref<64x384xf32, #tpu.memory_space<vmem>>, vector<64x384xf32>
    tpu.vector_store %arg14[%c0_8, %c0_9], %9 {strides = array<i32>} : memref<64x384xf32, #tpu.memory_space<vmem>>, vector<64x384xf32>,
    %c0_10 = arith.constant 0 : index
    %c0_11 = arith.constant 0 : index
    %11 = vector.load %arg6[%c0_10, %c0_11] : memref<128x384xf32, #tpu.memory_space<vmem>>, vector<128x384xf32>
    %c0_12 = arith.constant 0 : index
    %c0_13 = arith.constant 0 : index
    %12 = vector.load %arg7[%c0_12, %c0_13] : memref<1x128xf32, #tpu.memory_space<vmem>>, vector<1x128xf32>
    %c0_14 = arith.constant 0 : index
    %c0_15 = arith.constant 0 : index
    %13 = vector.load %arg3[%c0_14, %c0_15] : memref<8x1xi32, #tpu.memory_space<vmem>>, vector<8x1xi32>
    %c8_i32 = arith.constant 8 : i32
    %14 = arith.muli %arg1, %c8_i32 : i32
    %c0_16 = arith.constant 0 : index
    %c0_17 = arith.constant 0 : index
    %15 = vector.load %arg12[%c0_16, %c0_17] : memref<8x128xf32, #tpu.memory_space<vmem>>, vector<8x128xf32>
    %c0_18 = arith.constant 0 : index
    %c0_19 = arith.constant 0 : index
    %16 = vector.load %arg13[%c0_18, %c0_19] : memref<8x128xf32, #tpu.memory_space<vmem>>, vector<8x128xf32>
    %c0_i32_20 = arith.constant 0 : i32
    %c8_i32_21 = arith.constant 8 : i32
    %17 = arith.muli %c0_i32_20, %c8_i32_21 : i32
    %18 = tpu.assume_multiple %17, 8 : i32
    %19 = arith.index_cast %18 : i32 to index
    %c0_22 = arith.constant 0 : index
    %20 = vector.load %arg14[%19, %c0_22] : memref<64x384xf32, #tpu.memory_space<vmem>>, vector<8x384xf32>
    %cst_23 = arith.constant dense<0.000000e+00> : vector<8x384xf32>
    %21 = tpu.matmul %15, %11, %cst_23 {dimension_numbers = #tpu.dot_dimension_numbers<[1], [0], [0], [1], [0, 0, 1, 1], [], []>} : vector<8x128xf32>, vector<128x384xf32>, vector<8x384xf32> -> vector<8x384xf32>
    %22 = vector.extract_strided_slice %20 {offsets = [0, 0], sizes = [8, 128], strides = [1, 1]} : vector<8x384xf32> to vector<8x128xf32>
    %23 = vector.extract_strided_slice %21 {offsets = [0, 0], sizes = [8, 128], strides = [1, 1]} : vector<8x384xf32> to vector<8x128xf32>
    %24 = arith.addf %22, %23 : vector<8x128xf32>
    %25 = arith.negf %24 : vector<8x128xf32>
    %26 = math.exp %25 : vector<8x128xf32>
    %cst_24 = arith.constant 1.000000e+00 : f32
    %27 = vector.broadcast %cst_24 : f32 to vector<8x128xf32>
    %28 = arith.addf %27, %26 : vector<8x128xf32>
    %29 = arith.divf %27, %28 : vector<8x128xf32>
    %30 = vector.extract_strided_slice %20 {offsets = [0, 128], sizes = [8, 128], strides = [1, 1]} : vector<8x384xf32> to vector<8x128xf32>
    %31 = vector.extract_strided_slice %21 {offsets = [0, 128], sizes = [8, 128], strides = [1, 1]} : vector<8x384xf32> to vector<8x128xf32>
    %32 = arith.addf %30, %31 : vector<8x128xf32>
    %33 = arith.negf %32 : vector<8x128xf32>
    %34 = math.exp %33 : vector<8x128xf32>
    %cst_25 = arith.constant 1.000000e+00 : f32
    %35 = vector.broadcast %cst_25 : f32 to vector<8x128xf32>
    %36 = arith.addf %35, %34 : vector<8x128xf32>
    %37 = arith.divf %35, %36 : vector<8x128xf32>
    %38 = vector.extract_strided_slice %20 {offsets = [0, 256], sizes = [8, 128], strides = [1, 1]} : vector<8x384xf32> to vector<8x128xf32>
    %39 = vector.extract_strided_slice %21 {offsets = [0, 256], sizes = [8, 128], strides = [1, 1]} : vector<8x384xf32> to vector<8x128xf32>
    %40 = vector.broadcast %12 : vector<1x128xf32> to vector<8x128xf32>
    %41 = arith.addf %39, %40 : vector<8x128xf32>
    %42 = arith.mulf %29, %41 : vector<8x128xf32>
    %43 = arith.addf %38, %42 : vector<8x128xf32>
    %44 = math.tanh %43 : vector<8x128xf32>
    %cst_26 = arith.constant 1.000000e+00 : f32
    %45 = vector.broadcast %cst_26 : f32 to vector<8x128xf32>
    %46 = arith.subf %45, %37 : vector<8x128xf32>
    %47 = arith.mulf %46, %44 : vector<8x128xf32>
    %48 = arith.mulf %37, %15 : vector<8x128xf32>
    %49 = arith.addf %47, %48 : vector<8x128xf32>
    %50 = arith.addi %14, %c0_i32_20 : i32
    %51 = vector.broadcast %50 : i32 to vector<8x1xi32>
    %52 = arith.cmpi eq, %13, %51 : vector<8x1xi32>
    %53 = vector.shape_cast %52 : vector<8x1xi1> to vector<8x1xi1>
    %54 = vector.broadcast %53 : vector<8x1xi1> to vector<8x128xi1>
    %55 = arith.select %54, %49, %16 : vector<8x128xi1>, vector<8x128xf32>
    %c1_i32 = arith.constant 1 : i32
    %c8_i32_27 = arith.constant 8 : i32
    %56 = arith.muli %c1_i32, %c8_i32_27 : i32
    %57 = tpu.assume_multiple %56, 8 : i32
    %58 = arith.index_cast %57 : i32 to index
    %c0_28 = arith.constant 0 : index
    %59 = vector.load %arg14[%58, %c0_28] : memref<64x384xf32, #tpu.memory_space<vmem>>, vector<8x384xf32>
    %cst_29 = arith.constant dense<0.000000e+00> : vector<8x384xf32>
    %60 = tpu.matmul %49, %11, %cst_29 {dimension_numbers = #tpu.dot_dimension_numbers<[1], [0], [0], [1], [0, 0, 1, 1], [], []>} : vector<8x128xf32>, vector<128x384xf32>, vector<8x384xf32> -> vector<8x384xf32>
    %61 = vector.extract_strided_slice %59 {offsets = [0, 0], sizes = [8, 128], strides = [1, 1]} : vector<8x384xf32> to vector<8x128xf32>
    %62 = vector.extract_strided_slice %60 {offsets = [0, 0], sizes = [8, 128], strides = [1, 1]} : vector<8x384xf32> to vector<8x128xf32>
    %63 = arith.addf %61, %62 : vector<8x128xf32>
    %64 = arith.negf %63 : vector<8x128xf32>
    %65 = math.exp %64 : vector<8x128xf32>
    %cst_30 = arith.constant 1.000000e+00 : f32
    %66 = vector.broadcast %cst_30 : f32 to vector<8x128xf32>
    %67 = arith.addf %66, %65 : vector<8x128xf32>
    %68 = arith.divf %66, %67 : vector<8x128xf32>
    %69 = vector.extract_strided_slice %59 {offsets = [0, 128], sizes = [8, 128], strides = [1, 1]} : vector<8x384xf32> to vector<8x128xf32>
    %70 = vector.extract_strided_slice %60 {offsets = [0, 128], sizes = [8, 128], strides = [1, 1]} : vector<8x384xf32> to vector<8x128xf32>
    %71 = arith.addf %69, %70 : vector<8x128xf32>
    %72 = arith.negf %71 : vector<8x128xf32>
    %73 = math.exp %72 : vector<8x128xf32>
    %cst_31 = arith.constant 1.000000e+00 : f32
    %74 = vector.broadcast %cst_31 : f32 to vector<8x128xf32>
    %75 = arith.addf %74, %73 : vector<8x128xf32>
    %76 = arith.divf %74, %75 : vector<8x128xf32>
    %77 = vector.extract_strided_slice %59 {offsets = [0, 256], sizes = [8, 128], strides = [1, 1]} : vector<8x384xf32> to vector<8x128xf32>
    %78 = vector.extract_strided_slice %60 {offsets = [0, 256], sizes = [8, 128], strides = [1, 1]} : vector<8x384xf32> to vector<8x128xf32>
    %79 = vector.broadcast %12 : vector<1x128xf32> to vector<8x128xf32>
    %80 = arith.addf %78, %79 : vector<8x128xf32>
    %81 = arith.mulf %68, %80 : vector<8x128xf32>
    %82 = arith.addf %77, %81 : vector<8x128xf32>
    %83 = math.tanh %82 : vector<8x128xf32>
    %cst_32 = arith.constant 1.000000e+00 : f32
    %84 = vector.broadcast %cst_32 : f32 to vector<8x128xf32>
    %85 = arith.subf %84, %76 : vector<8x128xf32>
    %86 = arith.mulf %85, %83 : vector<8x128xf32>
    %87 = arith.mulf %76, %49 : vector<8x128xf32>
    %88 = arith.addf %86, %87 : vector<8x128xf32>
    %89 = arith.addi %14, %c1_i32 : i32
    %90 = vector.broadcast %89 : i32 to vector<8x1xi32>
    %91 = arith.cmpi eq, %13, %90 : vector<8x1xi32>
    %92 = vector.shape_cast %91 : vector<8x1xi1> to vector<8x1xi1>
    %93 = vector.broadcast %92 : vector<8x1xi1> to vector<8x128xi1>
    %94 = arith.select %93, %88, %55 : vector<8x128xi1>, vector<8x128xf32>
    %c2_i32 = arith.constant 2 : i32
    %c8_i32_33 = arith.constant 8 : i32
    %95 = arith.muli %c2_i32, %c8_i32_33 : i32
    %96 = tpu.assume_multiple %95, 8 : i32
    %97 = arith.index_cast %96 : i32 to index
    %c0_34 = arith.constant 0 : index
    %98 = vector.load %arg14[%97, %c0_34] : memref<64x384xf32, #tpu.memory_space<vmem>>, vector<8x384xf32>
    %cst_35 = arith.constant dense<0.000000e+00> : vector<8x384xf32>
    %99 = tpu.matmul %88, %11, %cst_35 {dimension_numbers = #tpu.dot_dimension_numbers<[1], [0], [0], [1], [0, 0, 1, 1], [], []>} : vector<8x128xf32>, vector<128x384xf32>, vector<8x384xf32> -> vector<8x384xf32>
    %100 = vector.extract_strided_slice %98 {offsets = [0, 0], sizes = [8, 128], strides = [1, 1]} : vector<8x384xf32> to vector<8x128xf32>
    %101 = vector.extract_strided_slice %99 {offsets = [0, 0], sizes = [8, 128], strides = [1, 1]} : vector<8x384xf32> to vector<8x128xf32>
    %102 = arith.addf %100, %101 : vector<8x128xf32>
    %103 = arith.negf %102 : vector<8x128xf32>
    %104 = math.exp %103 : vector<8x128xf32>
    %cst_36 = arith.constant 1.000000e+00 : f32
    %105 = vector.broadcast %cst_36 : f32 to vector<8x128xf32>
    %106 = arith.addf %105, %104 : vector<8x128xf32>
    %107 = arith.divf %105, %106 : vector<8x128xf32>
    %108 = vector.extract_strided_slice %98 {offsets = [0, 128], sizes = [8, 128], strides = [1, 1]} : vector<8x384xf32> to vector<8x128xf32>
    %109 = vector.extract_strided_slice %99 {offsets = [0, 128], sizes = [8, 128], strides = [1, 1]} : vector<8x384xf32> to vector<8x128xf32>
    %110 = arith.addf %108, %109 : vector<8x128xf32>
    %111 = arith.negf %110 : vector<8x128xf32>
    %112 = math.exp %111 : vector<8x128xf32>
    %cst_37 = arith.constant 1.000000e+00 : f32
    %113 = vector.broadcast %cst_37 : f32 to vector<8x128xf32>
    %114 = arith.addf %113, %112 : vector<8x128xf32>
    %115 = arith.divf %113, %114 : vector<8x128xf32>
    %116 = vector.extract_strided_slice %98 {offsets = [0, 256], sizes = [8, 128], strides = [1, 1]} : vector<8x384xf32> to vector<8x128xf32>
    %117 = vector.extract_strided_slice %99 {offsets = [0, 256], sizes = [8, 128], strides = [1, 1]} : vector<8x384xf32> to vector<8x128xf32>
    %118 = vector.broadcast %12 : vector<1x128xf32> to vector<8x128xf32>
    %119 = arith.addf %117, %118 : vector<8x128xf32>
    %120 = arith.mulf %107, %119 : vector<8x128xf32>
    %121 = arith.addf %116, %120 : vector<8x128xf32>
    %122 = math.tanh %121 : vector<8x128xf32>
    %cst_38 = arith.constant 1.000000e+00 : f32
    %123 = vector.broadcast %cst_38 : f32 to vector<8x128xf32>
    %124 = arith.subf %123, %115 : vector<8x128xf32>
    %125 = arith.mulf %124, %122 : vector<8x128xf32>
    %126 = arith.mulf %115, %88 : vector<8x128xf32>
    %127 = arith.addf %125, %126 : vector<8x128xf32>
    %128 = arith.addi %14, %c2_i32 : i32
    %129 = vector.broadcast %128 : i32 to vector<8x1xi32>
    %130 = arith.cmpi eq, %13, %129 : vector<8x1xi32>
    %131 = vector.shape_cast %130 : vector<8x1xi1> to vector<8x1xi1>
    %132 = vector.broadcast %131 : vector<8x1xi1> to vector<8x128xi1>
    %133 = arith.select %132, %127, %94 : vector<8x128xi1>, vector<8x128xf32>
    %c3_i32 = arith.constant 3 : i32
    %c8_i32_39 = arith.constant 8 : i32
    %134 = arith.muli %c3_i32, %c8_i32_39 : i32
    %135 = tpu.assume_multiple %134, 8 : i32
    %136 = arith.index_cast %135 : i32 to index
    %c0_40 = arith.constant 0 : index
    %137 = vector.load %arg14[%136, %c0_40] : memref<64x384xf32, #tpu.memory_space<vmem>>, vector<8x384xf32>
    %cst_41 = arith.constant dense<0.000000e+00> : vector<8x384xf32>
    %138 = tpu.matmul %127, %11, %cst_41 {dimension_numbers = #tpu.dot_dimension_numbers<[1], [0], [0], [1], [0, 0, 1, 1], [], []>} : vector<8x128xf32>, vector<128x384xf32>, vector<8x384xf32> -> vector<8x384xf32>
    %139 = vector.extract_strided_slice %137 {offsets = [0, 0], sizes = [8, 128], strides = [1, 1]} : vector<8x384xf32> to vector<8x128xf32>
    %140 = vector.extract_strided_slice %138 {offsets = [0, 0], sizes = [8, 128], strides = [1, 1]} : vector<8x384xf32> to vector<8x128xf32>
    %141 = arith.addf %139, %140 : vector<8x128xf32>
    %142 = arith.negf %141 : vector<8x128xf32>
    %143 = math.exp %142 : vector<8x128xf32>
    %cst_42 = arith.constant 1.000000e+00 : f32
    %144 = vector.broadcast %cst_42 : f32 to vector<8x128xf32>
    %145 = arith.addf %144, %143 : vector<8x128xf32>
    %146 = arith.divf %144, %145 : vector<8x128xf32>
    %147 = vector.extract_strided_slice %137 {offsets = [0, 128], sizes = [8, 128], strides = [1, 1]} : vector<8x384xf32> to vector<8x128xf32>
    %148 = vector.extract_strided_slice %138 {offsets = [0, 128], sizes = [8, 128], strides = [1, 1]} : vector<8x384xf32> to vector<8x128xf32>
    %149 = arith.addf %147, %148 : vector<8x128xf32>
    %150 = arith.negf %149 : vector<8x128xf32>
    %151 = math.exp %150 : vector<8x128xf32>
    %cst_43 = arith.constant 1.000000e+00 : f32
    %152 = vector.broadcast %cst_43 : f32 to vector<8x128xf32>
    %153 = arith.addf %152, %151 : vector<8x128xf32>
    %154 = arith.divf %152, %153 : vector<8x128xf32>
    %155 = vector.extract_strided_slice %137 {offsets = [0, 256], sizes = [8, 128], strides = [1, 1]} : vector<8x384xf32> to vector<8x128xf32>
    %156 = vector.extract_strided_slice %138 {offsets = [0, 256], sizes = [8, 128], strides = [1, 1]} : vector<8x384xf32> to vector<8x128xf32>
    %157 = vector.broadcast %12 : vector<1x128xf32> to vector<8x128xf32>
    %158 = arith.addf %156, %157 : vector<8x128xf32>
    %159 = arith.mulf %146, %158 : vector<8x128xf32>
    %160 = arith.addf %155, %159 : vector<8x128xf32>
    %161 = math.tanh %160 : vector<8x128xf32>
    %cst_44 = arith.constant 1.000000e+00 : f32
    %162 = vector.broadcast %cst_44 : f32 to vector<8x128xf32>
    %163 = arith.subf %162, %154 : vector<8x128xf32>
    %164 = arith.mulf %163, %161 : vector<8x128xf32>
    %165 = arith.mulf %154, %127 : vector<8x128xf32>
    %166 = arith.addf %164, %165 : vector<8x128xf32>
    %167 = arith.addi %14, %c3_i32 : i32
    %168 = vector.broadcast %167 : i32 to vector<8x1xi32>
    %169 = arith.cmpi eq, %13, %168 : vector<8x1xi32>
    %170 = vector.shape_cast %169 : vector<8x1xi1> to vector<8x1xi1>
    %171 = vector.broadcast %170 : vector<8x1xi1> to vector<8x128xi1>
    %172 = arith.select %171, %166, %133 : vector<8x128xi1>, vector<8x128xf32>
    %c4_i32 = arith.constant 4 : i32
    %c8_i32_45 = arith.constant 8 : i32
    %173 = arith.muli %c4_i32, %c8_i32_45 : i32
    %174 = tpu.assume_multiple %173, 8 : i32
    %175 = arith.index_cast %174 : i32 to index
    %c0_46 = arith.constant 0 : index
    %176 = vector.load %arg14[%175, %c0_46] : memref<64x384xf32, #tpu.memory_space<vmem>>, vector<8x384xf32>
    %cst_47 = arith.constant dense<0.000000e+00> : vector<8x384xf32>
    %177 = tpu.matmul %166, %11, %cst_47 {dimension_numbers = #tpu.dot_dimension_numbers<[1], [0], [0], [1], [0, 0, 1, 1], [], []>} : vector<8x128xf32>, vector<128x384xf32>, vector<8x384xf32> -> vector<8x384xf32>
    %178 = vector.extract_strided_slice %176 {offsets = [0, 0], sizes = [8, 128], strides = [1, 1]} : vector<8x384xf32> to vector<8x128xf32>
    %179 = vector.extract_strided_slice %177 {offsets = [0, 0], sizes = [8, 128], strides = [1, 1]} : vector<8x384xf32> to vector<8x128xf32>
    %180 = arith.addf %178, %179 : vector<8x128xf32>
    %181 = arith.negf %180 : vector<8x128xf32>
    %182 = math.exp %181 : vector<8x128xf32>
    %cst_48 = arith.constant 1.000000e+00 : f32
    %183 = vector.broadcast %cst_48 : f32 to vector<8x128xf32>
    %184 = arith.addf %183, %182 : vector<8x128xf32>
    %185 = arith.divf %183, %184 : vector<8x128xf32>
    %186 = vector.extract_strided_slice %176 {offsets = [0, 128], sizes = [8, 128], strides = [1, 1]} : vector<8x384xf32> to vector<8x128xf32>
    %187 = vector.extract_strided_slice %177 {offsets = [0, 128], sizes = [8, 128], strides = [1, 1]} : vector<8x384xf32> to vector<8x128xf32>
    %188 = arith.addf %186, %187 : vector<8x128xf32>
    %189 = arith.negf %188 : vector<8x128xf32>
    %190 = math.exp %189 : vector<8x128xf32>
    %cst_49 = arith.constant 1.000000e+00 : f32
    %191 = vector.broadcast %cst_49 : f32 to vector<8x128xf32>
    %192 = arith.addf %191, %190 : vector<8x128xf32>
    %193 = arith.divf %191, %192 : vector<8x128xf32>
    %194 = vector.extract_strided_slice %176 {offsets = [0, 256], sizes = [8, 128], strides = [1, 1]} : vector<8x384xf32> to vector<8x128xf32>
    %195 = vector.extract_strided_slice %177 {offsets = [0, 256], sizes = [8, 128], strides = [1, 1]} : vector<8x384xf32> to vector<8x128xf32>
    %196 = vector.broadcast %12 : vector<1x128xf32> to vector<8x128xf32>
    %197 = arith.addf %195, %196 : vector<8x128xf32>
    %198 = arith.mulf %185, %197 : vector<8x128xf32>
    %199 = arith.addf %194, %198 : vector<8x128xf32>
    %200 = math.tanh %199 : vector<8x128xf32>
    %cst_50 = arith.constant 1.000000e+00 : f32
    %201 = vector.broadcast %cst_50 : f32 to vector<8x128xf32>
    %202 = arith.subf %201, %193 : vector<8x128xf32>
    %203 = arith.mulf %202, %200 : vector<8x128xf32>
    %204 = arith.mulf %193, %166 : vector<8x128xf32>
    %205 = arith.addf %203, %204 : vector<8x128xf32>
    %206 = arith.addi %14, %c4_i32 : i32
    %207 = vector.broadcast %206 : i32 to vector<8x1xi32>
    %208 = arith.cmpi eq, %13, %207 : vector<8x1xi32>
    %209 = vector.shape_cast %208 : vector<8x1xi1> to vector<8x1xi1>
    %210 = vector.broadcast %209 : vector<8x1xi1> to vector<8x128xi1>
    %211 = arith.select %210, %205, %172 : vector<8x128xi1>, vector<8x128xf32>
    %c5_i32 = arith.constant 5 : i32
    %c8_i32_51 = arith.constant 8 : i32
    %212 = arith.muli %c5_i32, %c8_i32_51 : i32
    %213 = tpu.assume_multiple %212, 8 : i32
    %214 = arith.index_cast %213 : i32 to index
    %c0_52 = arith.constant 0 : index
    %215 = vector.load %arg14[%214, %c0_52] : memref<64x384xf32, #tpu.memory_space<vmem>>, vector<8x384xf32>
    %cst_53 = arith.constant dense<0.000000e+00> : vector<8x384xf32>
    %216 = tpu.matmul %205, %11, %cst_53 {dimension_numbers = #tpu.dot_dimension_numbers<[1], [0], [0], [1], [0, 0, 1, 1], [], []>} : vector<8x128xf32>, vector<128x384xf32>, vector<8x384xf32> -> vector<8x384xf32>
    %217 = vector.extract_strided_slice %215 {offsets = [0, 0], sizes = [8, 128], strides = [1, 1]} : vector<8x384xf32> to vector<8x128xf32>
    %218 = vector.extract_strided_slice %216 {offsets = [0, 0], sizes = [8, 128], strides = [1, 1]} : vector<8x384xf32> to vector<8x128xf32>
    %219 = arith.addf %217, %218 : vector<8x128xf32>
    %220 = arith.negf %219 : vector<8x128xf32>
    %221 = math.exp %220 : vector<8x128xf32>
    %cst_54 = arith.constant 1.000000e+00 : f32
    %222 = vector.broadcast %cst_54 : f32 to vector<8x128xf32>
    %223 = arith.addf %222, %221 : vector<8x128xf32>
    %224 = arith.divf %222, %223 : vector<8x128xf32>
    %225 = vector.extract_strided_slice %215 {offsets = [0, 128], sizes = [8, 128], strides = [1, 1]} : vector<8x384xf32> to vector<8x128xf32>
    %226 = vector.extract_strided_slice %216 {offsets = [0, 128], sizes = [8, 128], strides = [1, 1]} : vector<8x384xf32> to vector<8x128xf32>
    %227 = arith.addf %225, %226 : vector<8x128xf32>
    %228 = arith.negf %227 : vector<8x128xf32>
    %229 = math.exp %228 : vector<8x128xf32>
    %cst_55 = arith.constant 1.000000e+00 : f32
    %230 = vector.broadcast %cst_55 : f32 to vector<8x128xf32>
    %231 = arith.addf %230, %229 : vector<8x128xf32>
    %232 = arith.divf %230, %231 : vector<8x128xf32>
    %233 = vector.extract_strided_slice %215 {offsets = [0, 256], sizes = [8, 128], strides = [1, 1]} : vector<8x384xf32> to vector<8x128xf32>
    %234 = vector.extract_strided_slice %216 {offsets = [0, 256], sizes = [8, 128], strides = [1, 1]} : vector<8x384xf32> to vector<8x128xf32>
    %235 = vector.broadcast %12 : vector<1x128xf32> to vector<8x128xf32>
    %236 = arith.addf %234, %235 : vector<8x128xf32>
    %237 = arith.mulf %224, %236 : vector<8x128xf32>
    %238 = arith.addf %233, %237 : vector<8x128xf32>
    %239 = math.tanh %238 : vector<8x128xf32>
    %cst_56 = arith.constant 1.000000e+00 : f32
    %240 = vector.broadcast %cst_56 : f32 to vector<8x128xf32>
    %241 = arith.subf %240, %232 : vector<8x128xf32>
    %242 = arith.mulf %241, %239 : vector<8x128xf32>
    %243 = arith.mulf %232, %205 : vector<8x128xf32>
    %244 = arith.addf %242, %243 : vector<8x128xf32>
    %245 = arith.addi %14, %c5_i32 : i32
    %246 = vector.broadcast %245 : i32 to vector<8x1xi32>
    %247 = arith.cmpi eq, %13, %246 : vector<8x1xi32>
    %248 = vector.shape_cast %247 : vector<8x1xi1> to vector<8x1xi1>
    %249 = vector.broadcast %248 : vector<8x1xi1> to vector<8x128xi1>
    %250 = arith.select %249, %244, %211 : vector<8x128xi1>, vector<8x128xf32>
    %c6_i32 = arith.constant 6 : i32
    %c8_i32_57 = arith.constant 8 : i32
    %251 = arith.muli %c6_i32, %c8_i32_57 : i32
    %252 = tpu.assume_multiple %251, 8 : i32
    %253 = arith.index_cast %252 : i32 to index
    %c0_58 = arith.constant 0 : index
    %254 = vector.load %arg14[%253, %c0_58] : memref<64x384xf32, #tpu.memory_space<vmem>>, vector<8x384xf32>
    %cst_59 = arith.constant dense<0.000000e+00> : vector<8x384xf32>
    %255 = tpu.matmul %244, %11, %cst_59 {dimension_numbers = #tpu.dot_dimension_numbers<[1], [0], [0], [1], [0, 0, 1, 1], [], []>} : vector<8x128xf32>, vector<128x384xf32>, vector<8x384xf32> -> vector<8x384xf32>
    %256 = vector.extract_strided_slice %254 {offsets = [0, 0], sizes = [8, 128], strides = [1, 1]} : vector<8x384xf32> to vector<8x128xf32>
    %257 = vector.extract_strided_slice %255 {offsets = [0, 0], sizes = [8, 128], strides = [1, 1]} : vector<8x384xf32> to vector<8x128xf32>
    %258 = arith.addf %256, %257 : vector<8x128xf32>
    %259 = arith.negf %258 : vector<8x128xf32>
    %260 = math.exp %259 : vector<8x128xf32>
    %cst_60 = arith.constant 1.000000e+00 : f32
    %261 = vector.broadcast %cst_60 : f32 to vector<8x128xf32>
    %262 = arith.addf %261, %260 : vector<8x128xf32>
    %263 = arith.divf %261, %262 : vector<8x128xf32>
    %264 = vector.extract_strided_slice %254 {offsets = [0, 128], sizes = [8, 128], strides = [1, 1]} : vector<8x384xf32> to vector<8x128xf32>
    %265 = vector.extract_strided_slice %255 {offsets = [0, 128], sizes = [8, 128], strides = [1, 1]} : vector<8x384xf32> to vector<8x128xf32>
    %266 = arith.addf %264, %265 : vector<8x128xf32>
    %267 = arith.negf %266 : vector<8x128xf32>
    %268 = math.exp %267 : vector<8x128xf32>
    %cst_61 = arith.constant 1.000000e+00 : f32
    %269 = vector.broadcast %cst_61 : f32 to vector<8x128xf32>
    %270 = arith.addf %269, %268 : vector<8x128xf32>
    %271 = arith.divf %269, %270 : vector<8x128xf32>
    %272 = vector.extract_strided_slice %254 {offsets = [0, 256], sizes = [8, 128], strides = [1, 1]} : vector<8x384xf32> to vector<8x128xf32>
    %273 = vector.extract_strided_slice %255 {offsets = [0, 256], sizes = [8, 128], strides = [1, 1]} : vector<8x384xf32> to vector<8x128xf32>
    %274 = vector.broadcast %12 : vector<1x128xf32> to vector<8x128xf32>
    %275 = arith.addf %273, %274 : vector<8x128xf32>
    %276 = arith.mulf %263, %275 : vector<8x128xf32>
    %277 = arith.addf %272, %276 : vector<8x128xf32>
    %278 = math.tanh %277 : vector<8x128xf32>
    %cst_62 = arith.constant 1.000000e+00 : f32
    %279 = vector.broadcast %cst_62 : f32 to vector<8x128xf32>
    %280 = arith.subf %279, %271 : vector<8x128xf32>
    %281 = arith.mulf %280, %278 : vector<8x128xf32>
    %282 = arith.mulf %271, %244 : vector<8x128xf32>
    %283 = arith.addf %281, %282 : vector<8x128xf32>
    %284 = arith.addi %14, %c6_i32 : i32
    %285 = vector.broadcast %284 : i32 to vector<8x1xi32>
    %286 = arith.cmpi eq, %13, %285 : vector<8x1xi32>
    %287 = vector.shape_cast %286 : vector<8x1xi1> to vector<8x1xi1>
    %288 = vector.broadcast %287 : vector<8x1xi1> to vector<8x128xi1>
    %289 = arith.select %288, %283, %250 : vector<8x128xi1>, vector<8x128xf32>
    %c7_i32 = arith.constant 7 : i32
    %c8_i32_63 = arith.constant 8 : i32
    %290 = arith.muli %c7_i32, %c8_i32_63 : i32
    %291 = tpu.assume_multiple %290, 8 : i32
    %292 = arith.index_cast %291 : i32 to index
    %c0_64 = arith.constant 0 : index
    %293 = vector.load %arg14[%292, %c0_64] : memref<64x384xf32, #tpu.memory_space<vmem>>, vector<8x384xf32>
    %cst_65 = arith.constant dense<0.000000e+00> : vector<8x384xf32>
    %294 = tpu.matmul %283, %11, %cst_65 {dimension_numbers = #tpu.dot_dimension_numbers<[1], [0], [0], [1], [0, 0, 1, 1], [], []>} : vector<8x128xf32>, vector<128x384xf32>, vector<8x384xf32> -> vector<8x384xf32>
    %295 = vector.extract_strided_slice %293 {offsets = [0, 0], sizes = [8, 128], strides = [1, 1]} : vector<8x384xf32> to vector<8x128xf32>
    %296 = vector.extract_strided_slice %294 {offsets = [0, 0], sizes = [8, 128], strides = [1, 1]} : vector<8x384xf32> to vector<8x128xf32>
    %297 = arith.addf %295, %296 : vector<8x128xf32>
    %298 = arith.negf %297 : vector<8x128xf32>
    %299 = math.exp %298 : vector<8x128xf32>
    %cst_66 = arith.constant 1.000000e+00 : f32
    %300 = vector.broadcast %cst_66 : f32 to vector<8x128xf32>
    %301 = arith.addf %300, %299 : vector<8x128xf32>
    %302 = arith.divf %300, %301 : vector<8x128xf32>
    %303 = vector.extract_strided_slice %293 {offsets = [0, 128], sizes = [8, 128], strides = [1, 1]} : vector<8x384xf32> to vector<8x128xf32>
    %304 = vector.extract_strided_slice %294 {offsets = [0, 128], sizes = [8, 128], strides = [1, 1]} : vector<8x384xf32> to vector<8x128xf32>
    %305 = arith.addf %303, %304 : vector<8x128xf32>
    %306 = arith.negf %305 : vector<8x128xf32>
    %307 = math.exp %306 : vector<8x128xf32>
    %cst_67 = arith.constant 1.000000e+00 : f32
    %308 = vector.broadcast %cst_67 : f32 to vector<8x128xf32>
    %309 = arith.addf %308, %307 : vector<8x128xf32>
    %310 = arith.divf %308, %309 : vector<8x128xf32>
    %311 = vector.extract_strided_slice %293 {offsets = [0, 256], sizes = [8, 128], strides = [1, 1]} : vector<8x384xf32> to vector<8x128xf32>
    %312 = vector.extract_strided_slice %294 {offsets = [0, 256], sizes = [8, 128], strides = [1, 1]} : vector<8x384xf32> to vector<8x128xf32>
    %313 = vector.broadcast %12 : vector<1x128xf32> to vector<8x128xf32>
    %314 = arith.addf %312, %313 : vector<8x128xf32>
    %315 = arith.mulf %302, %314 : vector<8x128xf32>
    %316 = arith.addf %311, %315 : vector<8x128xf32>
    %317 = math.tanh %316 : vector<8x128xf32>
    %cst_68 = arith.constant 1.000000e+00 : f32
    %318 = vector.broadcast %cst_68 : f32 to vector<8x128xf32>
    %319 = arith.subf %318, %310 : vector<8x128xf32>
    %320 = arith.mulf %319, %317 : vector<8x128xf32>
    %321 = arith.mulf %310, %283 : vector<8x128xf32>
    %322 = arith.addf %320, %321 : vector<8x128xf32>
    %323 = arith.addi %14, %c7_i32 : i32
    %324 = vector.broadcast %323 : i32 to vector<8x1xi32>
    %325 = arith.cmpi eq, %13, %324 : vector<8x1xi32>
    %326 = vector.shape_cast %325 : vector<8x1xi1> to vector<8x1xi1>
    %327 = vector.broadcast %326 : vector<8x1xi1> to vector<8x128xi1>
    %328 = arith.select %327, %322, %289 : vector<8x128xi1>, vector<8x128xf32>
    %c8_i32_69 = arith.constant 8 : i32
    %c0_70 = arith.constant 0 : index
    %c0_71 = arith.constant 0 : index
    %329 = vector.load %arg12[%c0_70, %c0_71] : memref<8x128xf32, #tpu.memory_space<vmem>>, vector<8x128xf32>
    tpu.vector_store %arg12[%c0_70, %c0_71], %322 {strides = array<i32>} : memref<8x128xf32, #tpu.memory_space<vmem>>, vector<8x128xf32>,
    %c0_72 = arith.constant 0 : index
    %c0_73 = arith.constant 0 : index
    %330 = vector.load %arg13[%c0_72, %c0_73] : memref<8x128xf32, #tpu.memory_space<vmem>>, vector<8x128xf32>
    tpu.vector_store %arg13[%c0_72, %c0_73], %328 {strides = array<i32>} : memref<8x128xf32, #tpu.memory_space<vmem>>, vector<8x128xf32>,
    %c1_i32_74 = arith.constant 1 : i32
    %331 = arith.cmpi eq, %arg1, %c1_i32_74 : i32
    %332 = arith.extui %331 : i1 to i32
    %c0_i32_75 = arith.constant 0 : i32
    %333 = arith.cmpi ne, %332, %c0_i32_75 : i32
    scf.if %333 {
      %c0_76 = arith.constant 0 : index
      %c0_77 = arith.constant 0 : index
      %334 = vector.load %arg11[%c0_76, %c0_77] : memref<8x128xf32, #tpu.memory_space<vmem>>, vector<8x128xf32>
      tpu.vector_store %arg11[%c0_76, %c0_77], %328 {strides = array<i32>} : memref<8x128xf32, #tpu.memory_space<vmem>>, vector<8x128xf32>,
      %c0_78 = arith.constant 0 : index
      %c0_79 = arith.constant 0 : index
      %335 = vector.load %arg8[%c0_78, %c0_79] : memref<128x128xf32, #tpu.memory_space<vmem>>, vector<128x128xf32>
      %cst_80 = arith.constant dense<0.000000e+00> : vector<8x128xf32>
      %336 = tpu.matmul %328, %335, %cst_80 {dimension_numbers = #tpu.dot_dimension_numbers<[1], [0], [0], [1], [0, 0, 1, 1], [], []>} : vector<8x128xf32>, vector<128x128xf32>, vector<8x128xf32> -> vector<8x128xf32>
      %c0_81 = arith.constant 0 : index
      %c0_82 = arith.constant 0 : index
      %337 = vector.load %arg9[%c0_81, %c0_82] : memref<1x128xf32, #tpu.memory_space<vmem>>, vector<1x128xf32>
      %338 = vector.broadcast %337 : vector<1x128xf32> to vector<8x128xf32>
      %339 = arith.addf %336, %338 : vector<8x128xf32>
      %c0_83 = arith.constant 0 : index
      %c0_84 = arith.constant 0 : index
      %340 = vector.load %arg10[%c0_83, %c0_84] : memref<8x128xf32, #tpu.memory_space<vmem>>, vector<8x128xf32>
      tpu.vector_store %arg10[%c0_83, %c0_84], %339 {strides = array<i32>} : memref<8x128xf32, #tpu.memory_space<vmem>>, vector<8x128xf32>,
    } else {
    }
    return
  }
  func.func @transform_0(%arg0: i32, %arg1: i32) -> (i32, i32, i32, i32) {
    %c0_i32 = arith.constant 0 : i32
    %c0_i32_0 = arith.constant 0 : i32
    %c0_i32_1 = arith.constant 0 : i32
    return %arg0, %arg1, %c0_i32, %c0_i32_0 : i32, i32, i32, i32
  }
  func.func @transform_1(%arg0: i32, %arg1: i32) -> (i32, i32) {
    %c0_i32 = arith.constant 0 : i32
    %c0_i32_0 = arith.constant 0 : i32
    return %arg0, %c0_i32 : i32, i32
  }
  func.func @transform_2(%arg0: i32, %arg1: i32) -> (i32, i32) {
    %c0_i32 = arith.constant 0 : i32
    %c0_i32_0 = arith.constant 0 : i32
    %c0_i32_1 = arith.constant 0 : i32
    return %c0_i32, %c0_i32_0 : i32, i32
  }
  func.func @transform_3(%arg0: i32, %arg1: i32) -> (i32, i32) {
    %c0_i32 = arith.constant 0 : i32
    %c0_i32_0 = arith.constant 0 : i32
    %c0_i32_1 = arith.constant 0 : i32
    return %c0_i32, %c0_i32_0 : i32, i32
  }
  func.func @transform_4(%arg0: i32, %arg1: i32) -> (i32, i32) {
    %c0_i32 = arith.constant 0 : i32
    %c0_i32_0 = arith.constant 0 : i32
    %c0_i32_1 = arith.constant 0 : i32
    return %c0_i32, %c0_i32_0 : i32, i32
  }
  func.func @transform_5(%arg0: i32, %arg1: i32) -> (i32, i32) {
    %c0_i32 = arith.constant 0 : i32
    %c0_i32_0 = arith.constant 0 : i32
    %c0_i32_1 = arith.constant 0 : i32
    return %c0_i32, %c0_i32_0 : i32, i32
  }
  func.func @transform_6(%arg0: i32, %arg1: i32) -> (i32, i32) {
    %c0_i32 = arith.constant 0 : i32
    %c0_i32_0 = arith.constant 0 : i32
    %c0_i32_1 = arith.constant 0 : i32
    return %c0_i32, %c0_i32_0 : i32, i32
  }
  func.func @transform_7(%arg0: i32, %arg1: i32) -> (i32, i32) {
    %c0_i32 = arith.constant 0 : i32
    %c0_i32_0 = arith.constant 0 : i32
    %c0_i32_1 = arith.constant 0 : i32
    return %c0_i32, %c0_i32_0 : i32, i32
  }
  func.func @transform_8(%arg0: i32, %arg1: i32) -> (i32, i32) {
    %c0_i32 = arith.constant 0 : i32
    %c0_i32_0 = arith.constant 0 : i32
    return %arg0, %c0_i32 : i32, i32
  }
  func.func @transform_9(%arg0: i32, %arg1: i32) -> (i32, i32) {
    %c0_i32 = arith.constant 0 : i32
    %c0_i32_0 = arith.constant 0 : i32
    return %arg0, %c0_i32 : i32, i32
  }
}

</mosaic_0001>

<llo_original>
// kernel: network_forward.1
$region0: #{network_forward.1}
  #allocation0 [shape = 'u32[]', space=smem, size = 0x4, offset = 0x4, fixed_abs, tag = 'smem constant byte address 0x4 - core index']
  #allocation1 [shape = 'u32[72,128]{1,0:T(1,128)}', space=vmem, size = 0x9000, scoped, tag = 'internal scratch']
  #allocation2 [shape = 'f32[8,128]{1,0:T(8,128)}', space=vmem, size = 0x1000, scoped, tag = 'scratch operand']
  #allocation3 [shape = 'f32[8,128]{1,0:T(8,128)}', space=vmem, size = 0x1000, scoped, tag = 'scratch operand']
  #allocation4 [shape = 'f32[64,384]{1,0:T(8,128)}', space=vmem, size = 0x18000, scoped, tag = 'scratch operand']
  %s0 = inlined_call_operand.vmem [shape: f32[1,2,64,128], index: 0, kind: input, shape index: {}]
  %s1 = inlined_call_operand.vmem [shape: s32[8,1], index: 1, kind: input, shape index: {}]
  %s2 = inlined_call_operand.vmem [shape: f32[128,384], index: 2, kind: input, shape index: {}]
  %s3 = inlined_call_operand.vmem [shape: f32[1,384], index: 3, kind: input, shape index: {}]
  %s4 = inlined_call_operand.vmem [shape: f32[128,384], index: 4, kind: input, shape index: {}]
  %s5 = inlined_call_operand.vmem [shape: f32[1,128], index: 5, kind: input, shape index: {}]
  %s6 = inlined_call_operand.vmem [shape: f32[128,128], index: 6, kind: input, shape index: {}]
  %s7 = inlined_call_operand.vmem [shape: f32[1,128], index: 7, kind: input, shape index: {}]
  %s8 = inlined_call_operand.vmem [shape: f32[8,128], index: 8, kind: output, shape index: {0}]
  %s9 = inlined_call_operand.vmem [shape: f32[8,128], index: 9, kind: output, shape index: {1}]
  %10 = xla_tuple %s8, %s9
  %s11 = sld [smem:[#allocation0]]
  $region81: #{network_forward.1} parent=0
    _
  %s13 = ssub.s32 1, %s11
  %s14 = scalar_select 0, %s13, %s11
  loop: start=0, step=1, limit=4
  $region2: #{network_forward.1} parent=0 // loop_pre_header
    _
  $region3: #{network_forward.1} parent=0 // loop_header
    %s16 = sphi 0, %s20
    %p17 = scmp.ge.s32.totalorder %s16, 4
    %s23 = sphi 0, %s35
    %s24 = sphi 0, %s31
    %s25 = sphi 0, %s23
    %s26 = sphi 0, %s24
    %s27 = sphi 0, %s25
    %s28 = sphi 0, %s26
    %s40 = sphi 0, %s42
    %s43 = sphi 0, %s40
    %s44 = sphi 0, %s43
    %s60 = sphi 0, %s44
    %s66 = sphi 0, %s68
    %s69 = sphi 0, %s66
    %s70 = sphi 0, %s69
    %s86 = sphi 0, %s70
    %s90 = sphi 0, %s90
    %s92 = sphi 0, %s90
    %s93 = sphi 0, %s92
    %s107 = sphi 0, %s93
    %s111 = sphi 0, %s111
    %s113 = sphi 0, %s111
    %s114 = sphi 0, %s113
    %s128 = sphi 0, %s114
    %s132 = sphi 0, %s132
    %s134 = sphi 0, %s132
    %s135 = sphi 0, %s134
    %s149 = sphi 0, %s135
    %s153 = sphi 0, %s153
    %s155 = sphi 0, %s153
    %s156 = sphi 0, %s155
    %s170 = sphi 0, %s156
    %s174 = sphi 0, %s174
    %s176 = sphi 0, %s174
    %s177 = sphi 0, %s176
    %s191 = sphi 0, %s177
    %s195 = sphi 0, %s195
    %s197 = sphi 0, %s195
    %s198 = sphi 0, %s197
    %s212 = sphi 0, %s198
    %s218 = sphi 0, %s220
    %s221 = sphi 0, %s218
    %s222 = sphi 0, %s221
    %s238 = sphi 0, %s222
    %s244 = sphi 0, %s246
    %s247 = sphi 0, %s244
    %s248 = sphi 0, %s247
    %s264 = sphi 0, %s248
  $region4: #{network_forward.1} parent=0 // loop_header_branch
    %19 = sbr.rel (%p17) target = $region8
  $region5: #{network_forward.1} parent=0 // loop_body
    %s21 = ssub.s32 %s16, 1
    %s22 = ssub.s32 %s16, 2
    %s29 = sadd.s32 1, %s24
    %p30 = scmp.ge.s32.totalorder %s29, 2
    %s31 = scalar_select %p30, 0, %s29
    %s32 = sadd.s32 1, %s23
    %s33 = scalar_select %p30, %s32, %s23
    %p34 = scmp.ge.s32.totalorder %s33, 1
    %s35 = scalar_select %p34, 0, %s33
    %s36 = ssub.s32 %s23, %s35
    %s37 = ssub.s32 %s24, %s31
    %s38 = sor.u32 %s36, %s37
    %p39 = scmp.eq.s32.totalorder %s38, 0
    %s41 = sadd.s32 %s40, 1
    %s42 = scalar_select %p39, %s40, %s41
    %p45 = pneg %p39
    %p46 = scmp.eq.s32.totalorder %s16, 1
    %p47 = por %p45, %p46
    %p48 = scmp.ne.s32.totalorder %s40, %s43
    %p49 = scmp.eq.s32.totalorder %s16, 0
    %p50 = por %p48, %p49
    %p51 = scmp.ne.s32.totalorder %s40, %s43
    %p52 = scmp.eq.s32.totalorder %s21, 1
    %p53 = por %p51, %p52
    %p54 = scmp.ne.s32.totalorder %s43, %s44
    %p55 = scmp.eq.s32.totalorder %s21, 0
    %p56 = por %p54, %p55
    %p57 = scmp.ne.s32.totalorder %s43, %s44
    %p58 = scmp.eq.s32.totalorder %s22, 1
    %p59 = por %p57, %p58
    %p61 = scmp.ne.s32.totalorder %s44, %s60
    %p62 = scmp.eq.s32.totalorder %s22, 0
    %p63 = por %p61, %p62
    %s64 = ssub.s32 %s23, %s35
    %p65 = scmp.eq.s32.totalorder %s64, 0
    %s67 = sadd.s32 %s66, 1
    %s68 = scalar_select %p65, %s66, %s67
    %p71 = pneg %p65
    %p72 = scmp.eq.s32.totalorder %s16, 1
    %p73 = por %p71, %p72
    %p74 = scmp.ne.s32.totalorder %s66, %s69
    %p75 = scmp.eq.s32.totalorder %s16, 0
    %p76 = por %p74, %p75
    %p77 = scmp.ne.s32.totalorder %s66, %s69
    %p78 = scmp.eq.s32.totalorder %s21, 1
    %p79 = por %p77, %p78
    %p80 = scmp.ne.s32.totalorder %s69, %s70
    %p81 = scmp.eq.s32.totalorder %s21, 0
    %p82 = por %p80, %p81
    %p83 = scmp.ne.s32.totalorder %s69, %s70
    %p84 = scmp.eq.s32.totalorder %s22, 1
    %p85 = por %p83, %p84
    %p87 = scmp.ne.s32.totalorder %s70, %s86
    %p88 = scmp.eq.s32.totalorder %s22, 0
    %p89 = por %p87, %p88
    %s91 = sadd.s32 %s90, 1
    %p94 = scmp.eq.s32.totalorder %s16, 1
    %p95 = scmp.ne.s32.totalorder %s90, %s92
    %p96 = scmp.eq.s32.totalorder %s16, 0
    %p97 = por %p95, %p96
    %p98 = scmp.ne.s32.totalorder %s90, %s92
    %p99 = scmp.eq.s32.totalorder %s21, 1
    %p100 = por %p98, %p99
    %p101 = scmp.ne.s32.totalorder %s92, %s93
    %p102 = scmp.eq.s32.totalorder %s21, 0
    %p103 = por %p101, %p102
    %p104 = scmp.ne.s32.totalorder %s92, %s93
    %p105 = scmp.eq.s32.totalorder %s22, 1
    %p106 = por %p104, %p105
    %p108 = scmp.ne.s32.totalorder %s93, %s107
    %p109 = scmp.eq.s32.totalorder %s22, 0
    %p110 = por %p108, %p109
    %s112 = sadd.s32 %s111, 1
    %p115 = scmp.eq.s32.totalorder %s16, 1
    %p116 = scmp.ne.s32.totalorder %s111, %s113
    %p117 = scmp.eq.s32.totalorder %s16, 0
    %p118 = por %p116, %p117
    %p119 = scmp.ne.s32.totalorder %s111, %s113
    %p120 = scmp.eq.s32.totalorder %s21, 1
    %p121 = por %p119, %p120
    %p122 = scmp.ne.s32.totalorder %s113, %s114
    %p123 = scmp.eq.s32.totalorder %s21, 0
    %p124 = por %p122, %p123
    %p125 = scmp.ne.s32.totalorder %s113, %s114
    %p126 = scmp.eq.s32.totalorder %s22, 1
    %p127 = por %p125, %p126
    %p129 = scmp.ne.s32.totalorder %s114, %s128
    %p130 = scmp.eq.s32.totalorder %s22, 0
    %p131 = por %p129, %p130
    %s133 = sadd.s32 %s132, 1
    %p136 = scmp.eq.s32.totalorder %s16, 1
    %p137 = scmp.ne.s32.totalorder %s132, %s134
    %p138 = scmp.eq.s32.totalorder %s16, 0
    %p139 = por %p137, %p138
    %p140 = scmp.ne.s32.totalorder %s132, %s134
    %p141 = scmp.eq.s32.totalorder %s21, 1
    %p142 = por %p140, %p141
    %p143 = scmp.ne.s32.totalorder %s134, %s135
    %p144 = scmp.eq.s32.totalorder %s21, 0
    %p145 = por %p143, %p144
    %p146 = scmp.ne.s32.totalorder %s134, %s135
    %p147 = scmp.eq.s32.totalorder %s22, 1
    %p148 = por %p146, %p147
    %p150 = scmp.ne.s32.totalorder %s135, %s149
    %p151 = scmp.eq.s32.totalorder %s22, 0
    %p152 = por %p150, %p151
    %s154 = sadd.s32 %s153, 1
    %p157 = scmp.eq.s32.totalorder %s16, 1
    %p158 = scmp.ne.s32.totalorder %s153, %s155
    %p159 = scmp.eq.s32.totalorder %s16, 0
    %p160 = por %p158, %p159
    %p161 = scmp.ne.s32.totalorder %s153, %s155
    %p162 = scmp.eq.s32.totalorder %s21, 1
    %p163 = por %p161, %p162
    %p164 = scmp.ne.s32.totalorder %s155, %s156
    %p165 = scmp.eq.s32.totalorder %s21, 0
    %p166 = por %p164, %p165
    %p167 = scmp.ne.s32.totalorder %s155, %s156
    %p168 = scmp.eq.s32.totalorder %s22, 1
    %p169 = por %p167, %p168
    %p171 = scmp.ne.s32.totalorder %s156, %s170
    %p172 = scmp.eq.s32.totalorder %s22, 0
    %p173 = por %p171, %p172
    %s175 = sadd.s32 %s174, 1
    %p178 = scmp.eq.s32.totalorder %s16, 1
    %p179 = scmp.ne.s32.totalorder %s174, %s176
    %p180 = scmp.eq.s32.totalorder %s16, 0
    %p181 = por %p179, %p180
    %p182 = scmp.ne.s32.totalorder %s174, %s176
    %p183 = scmp.eq.s32.totalorder %s21, 1
    %p184 = por %p182, %p183
    %p185 = scmp.ne.s32.totalorder %s176, %s177
    %p186 = scmp.eq.s32.totalorder %s21, 0
    %p187 = por %p185, %p186
    %p188 = scmp.ne.s32.totalorder %s176, %s177
    %p189 = scmp.eq.s32.totalorder %s22, 1
    %p190 = por %p188, %p189
    %p192 = scmp.ne.s32.totalorder %s177, %s191
    %p193 = scmp.eq.s32.totalorder %s22, 0
    %p194 = por %p192, %p193
    %s196 = sadd.s32 %s195, 1
    %p199 = scmp.eq.s32.totalorder %s16, 1
    %p200 = scmp.ne.s32.totalorder %s195, %s197
    %p201 = scmp.eq.s32.totalorder %s16, 0
    %p202 = por %p200, %p201
    %p203 = scmp.ne.s32.totalorder %s195, %s197
    %p204 = scmp.eq.s32.totalorder %s21, 1
    %p205 = por %p203, %p204
    %p206 = scmp.ne.s32.totalorder %s197, %s198
    %p207 = scmp.eq.s32.totalorder %s21, 0
    %p208 = por %p206, %p207
    %p209 = scmp.ne.s32.totalorder %s197, %s198
    %p210 = scmp.eq.s32.totalorder %s22, 1
    %p211 = por %p209, %p210
    %p213 = scmp.ne.s32.totalorder %s198, %s212
    %p214 = scmp.eq.s32.totalorder %s22, 0
    %p215 = por %p213, %p214
    %s216 = ssub.s32 %s23, %s35
    %p217 = scmp.eq.s32.totalorder %s216, 0
    %s219 = sadd.s32 %s218, 1
    %s220 = scalar_select %p217, %s218, %s219
    %p223 = pneg %p217
    %p224 = scmp.eq.s32.totalorder %s16, 1
    %p225 = por %p223, %p224
    %p226 = scmp.ne.s32.totalorder %s218, %s221
    %p227 = scmp.eq.s32.totalorder %s16, 0
    %p228 = por %p226, %p227
    %p229 = scmp.ne.s32.totalorder %s218, %s221
    %p230 = scmp.eq.s32.totalorder %s21, 1
    %p231 = por %p229, %p230
    %p232 = scmp.ne.s32.totalorder %s221, %s222
    %p233 = scmp.eq.s32.totalorder %s21, 0
    %p234 = por %p232, %p233
    %p235 = scmp.ne.s32.totalorder %s221, %s222
    %p236 = scmp.eq.s32.totalorder %s22, 1
    %p237 = por %p235, %p236
    %p239 = scmp.ne.s32.totalorder %s222, %s238
    %p240 = scmp.eq.s32.totalorder %s22, 0
    %p241 = por %p239, %p240
    %s242 = ssub.s32 %s23, %s35
    %p243 = scmp.eq.s32.totalorder %s242, 0
    %s245 = sadd.s32 %s244, 1
    %s246 = scalar_select %p243, %s244, %s245
    %p249 = pneg %p243
    %p250 = scmp.eq.s32.totalorder %s16, 1
    %p251 = por %p249, %p250
    %p252 = scmp.ne.s32.totalorder %s244, %s247
    %p253 = scmp.eq.s32.totalorder %s16, 0
    %p254 = por %p252, %p253
    %p255 = scmp.ne.s32.totalorder %s244, %s247
    %p256 = scmp.eq.s32.totalorder %s21, 1
    %p257 = por %p255, %p256
    %p258 = scmp.ne.s32.totalorder %s247, %s248
    %p259 = scmp.eq.s32.totalorder %s21, 0
    %p260 = por %p258, %p259
    %p261 = scmp.ne.s32.totalorder %s247, %s248
    %p262 = scmp.eq.s32.totalorder %s22, 1
    %p263 = por %p261, %p262
    %p265 = scmp.ne.s32.totalorder %s248, %s264
    %p266 = scmp.eq.s32.totalorder %s22, 0
    %p267 = por %p265, %p266
    %p268 = scmp.le.s32.totalorder 1, %s16
    %p269 = scmp.lt.s32.totalorder %s16, 3
    %p270 = pnand %p268, %p269
    %p271 = pneg %p270
    // Predicated region
    $region9: #{network_forward.1} parent=5 // pred_check
      _
    $region10: #{network_forward.1} parent=5 // pred_check_branch
      %273 = sbr.rel (%p270) target = $region12
    $region11: #{network_forward.1} parent=5 // pred_region
      %s274 = ssub.s32 %s16, 1
      // Predicated region
      $region13: #{network_forward.1} parent=11 // pred_check
        %p275 = pneg %p82
      $region14: #{network_forward.1} parent=11 // pred_check_branch
        %277 = sbr.rel (%p275) target = $region16
      $region15: #{network_forward.1} parent=11 // pred_region
        %p278 = scmp.lt.s32.totalorder %s25, 0
        %s279 = scalar_select %p278, %s25, 0
        %s280 = smul.addr %s279, 8
        %s281 = scalar_lea.vmem %s1, %s280
      $region16: #{network_forward.1} parent=11 // pred_fallthru
        _
      // Predicated region
      $region17: #{network_forward.1} parent=11 // pred_check
        %p282 = pneg %p103
      $region18: #{network_forward.1} parent=11 // pred_check_branch
        %284 = sbr.rel (%p282) target = $region20
      $region19: #{network_forward.1} parent=11 // pred_region
        _
      $region20: #{network_forward.1} parent=11 // pred_fallthru
        _
      // Predicated region
      $region21: #{network_forward.1} parent=11 // pred_check
        %p285 = pneg %p124
      $region22: #{network_forward.1} parent=11 // pred_check_branch
        %287 = sbr.rel (%p285) target = $region24
      $region23: #{network_forward.1} parent=11 // pred_region
        _
      $region24: #{network_forward.1} parent=11 // pred_fallthru
        _
      // Predicated region
      $region25: #{network_forward.1} parent=11 // pred_check
        %p288 = pneg %p145
      $region26: #{network_forward.1} parent=11 // pred_check_branch
        %290 = sbr.rel (%p288) target = $region28
      $region27: #{network_forward.1} parent=11 // pred_region
        _
      $region28: #{network_forward.1} parent=11 // pred_fallthru
        _
      // Predicated region
      $region29: #{network_forward.1} parent=11 // pred_check
        %p291 = pneg %p166
      $region30: #{network_forward.1} parent=11 // pred_check_branch
        %293 = sbr.rel (%p291) target = $region32
      $region31: #{network_forward.1} parent=11 // pred_region
        _
      $region32: #{network_forward.1} parent=11 // pred_fallthru
        _
      // Predicated region
      $region33: #{network_forward.1} parent=11 // pred_check
        %p294 = pneg %p187
      $region34: #{network_forward.1} parent=11 // pred_check_branch
        %296 = sbr.rel (%p294) target = $region36
      $region35: #{network_forward.1} parent=11 // pred_region
        _
      $region36: #{network_forward.1} parent=11 // pred_fallthru
        _
      // Predicated region
      $region37: #{network_forward.1} parent=11 // pred_check
        %p297 = pneg %p208
      $region38: #{network_forward.1} parent=11 // pred_check_branch
        %299 = sbr.rel (%p297) target = $region40
      $region39: #{network_forward.1} parent=11 // pred_region
        _
      $region40: #{network_forward.1} parent=11 // pred_fallthru
        _
    $region12: #{network_forward.1} parent=5 // pred_fallthru
      _
    %p300 = scmp.lt.s32.totalorder %s16, 2
    // Predicated region
    $region41: #{network_forward.1} parent=5 // pred_check
      %p301 = pneg %p300
    $region42: #{network_forward.1} parent=5 // pred_check_branch
      %303 = sbr.rel (%p301) target = $region44
    $region43: #{network_forward.1} parent=5 // pred_region
      // Predicated region
      $region45: #{network_forward.1} parent=43 // pred_check
        %p304 = pneg %p50
      $region46: #{network_forward.1} parent=43 // pred_check_branch
        %306 = sbr.rel (%p304) target = $region48
      $region47: #{network_forward.1} parent=43 // pred_region
        %p307 = scmp.lt.s32.totalorder %s23, 0
        %s308 = scalar_select %p307, %s23, 0
        %p309 = scmp.lt.s32.totalorder %s24, 1
        %s310 = scalar_select %p309, %s24, 1
        %s311 = smul.addr %s310, 8
        %s312 = smul.addr %s308, 16
        %s313 = sadd.s32 %s311, %s312
        %s314 = smul.addr %s313, 8
        %s315 = scalar_lea.vmem %s0, %s314
      $region48: #{network_forward.1} parent=43 // pred_fallthru
        _
    $region44: #{network_forward.1} parent=5 // pred_fallthru
      _
    %p316 = scmp.le.s32.totalorder 1, %s16
    %p317 = scmp.lt.s32.totalorder %s16, 3
    %p318 = pnand %p316, %p317
    %p319 = pneg %p318
    // Predicated region
    $region49: #{network_forward.1} parent=5 // pred_check
      _
    $region50: #{network_forward.1} parent=5 // pred_check_branch
      %321 = sbr.rel (%p318) target = $region52
    $region51: #{network_forward.1} parent=5 // pred_region
      %s322 = ssub.s32 %s16, 1
      %p323 = scmp.lt.s32.totalorder %s25, 0
      %s324 = scalar_select %p323, %s25, 0
      %p325 = scmp.lt.s32.totalorder %s26, 1
      %s326 = scalar_select %p325, %s26, 1
      %s327 = smul.addr %s326, 8
      %s328 = smul.addr %s324, 16
      %s329 = sadd.s32 %s327, %s328
      %s330 = smul.addr %s329, 8
      %s331 = scalar_lea.vmem %s0, %s330
      %p332 = pneg %p56
      %p333 = pneg %p53
      %p334 = scmp.lt.s32.totalorder %s25, 0
      %s335 = scalar_select %p334, %s25, 0
      %s336 = smul.addr %s335, 8
      %s337 = scalar_lea.vmem %s1, %s336
      %p338 = pneg %p82
      %p339 = pneg %p79
      %p340 = pneg %p103
      %p341 = pneg %p100
      %p342 = pneg %p124
      %p343 = pneg %p121
      %p344 = pneg %p145
      %p345 = pneg %p142
      %p346 = pneg %p166
      %p347 = pneg %p163
      %p348 = pneg %p187
      %p349 = pneg %p184
      %p350 = pneg %p208
      %p351 = pneg %p205
      %p352 = pneg %p234
      %p353 = pneg %p231
      %p354 = scmp.lt.s32.totalorder %s25, 0
      %s355 = scalar_select %p354, %s25, 0
      %s356 = smul.addr %s355, 8
      %s357 = scalar_lea.vmem %s8, %s356
      %p358 = pneg %p260
      %p359 = pneg %p257
      %p360 = scmp.lt.s32.totalorder %s25, 0
      %s361 = scalar_select %p360, %s25, 0
      %s362 = smul.addr %s361, 8
      %s363 = scalar_lea.vmem %s9, %s362
      %p364 = scmp.lt.s32.totalorder %s25, 0
      %s365 = scalar_select %p364, %s25, 0
      %p366 = scmp.lt.s32.totalorder %s26, 1
      %s367 = scalar_select %p366, %s26, 1
      %s368 = smul.addr %s367, 8
      %s369 = smul.addr %s365, 16
      %s370 = sadd.s32 %s368, %s369
      %s371 = smul.addr %s370, 8
      %s372 = scalar_lea.vmem %s0, %s371
      %p373 = scmp.lt.s32.totalorder %s25, 0
      %s374 = scalar_select %p373, %s25, 0
      %s375 = smul.addr %s374, 8
      %s376 = scalar_lea.vmem %s1, %s375
      %p377 = scmp.lt.s32.totalorder %s25, 0
      %s378 = scalar_select %p377, %s25, 0
      %s379 = smul.addr %s378, 8
      %s380 = scalar_lea.vmem %s8, %s379
      %p381 = scmp.lt.s32.totalorder %s25, 0
      %s382 = scalar_select %p381, %s25, 0
      %s383 = smul.addr %s382, 8
      %s384 = scalar_lea.vmem %s9, %s383
      %p385 = scmp.eq.s32.totalorder %s26, 0
      // Predicated region
      $region53: #{network_forward.1} parent=51 // pred_check
        %p386 = pneg %p385
      $region54: #{network_forward.1} parent=51 // pred_check_branch
        %388 = sbr.rel (%p386) target = $region56
      $region55: #{network_forward.1} parent=51 // pred_region
        %389 = vst [vmem:[#allocation2] sm:$0xff] 0.0
        %390 = vst [vmem:[#allocation3] sm:$0xff] 0.0
      $region56: #{network_forward.1} parent=51 // pred_fallthru
        _
      %v391 = vld [vmem:[%s372] sm:$0xff]
      %v392 = vld [vmem:[%s372 + $0x8] sm:$0xff]
      %v393 = vld [vmem:[%s372 + $0x10] sm:$0xff]
      %v394 = vld [vmem:[%s372 + $0x18] sm:$0xff]
      %v395 = vld [vmem:[%s372 + $0x20] sm:$0xff]
      %v396 = vld [vmem:[%s372 + $0x28] sm:$0xff]
      %v397 = vld [vmem:[%s372 + $0x30] sm:$0xff]
      %v398 = vld [vmem:[%s372 + $0x38] sm:$0xff]
      %v399 = vld [vmem:[%s2] sm:$0xff]
      %v400 = vld [vmem:[%s2 + $0x8] sm:$0xff]
      %v401 = vld [vmem:[%s2 + $0x10] sm:$0xff]
      %v402 = vld [vmem:[%s2 + $0x18] sm:$0xff]
      %v403 = vld [vmem:[%s2 + $0x20] sm:$0xff]
      %v404 = vld [vmem:[%s2 + $0x28] sm:$0xff]
      %v405 = vld [vmem:[%s2 + $0x30] sm:$0xff]
      %v406 = vld [vmem:[%s2 + $0x38] sm:$0xff]
      %v407 = vld [vmem:[%s2 + $0x40] sm:$0xff]
      %v408 = vld [vmem:[%s2 + $0x48] sm:$0xff]
      %v409 = vld [vmem:[%s2 + $0x50] sm:$0xff]
      %v410 = vld [vmem:[%s2 + $0x58] sm:$0xff]
      %v411 = vld [vmem:[%s2 + $0x60] sm:$0xff]
      %v412 = vld [vmem:[%s2 + $0x68] sm:$0xff]
      %v413 = vld [vmem:[%s2 + $0x70] sm:$0xff]
      %v414 = vld [vmem:[%s2 + $0x78] sm:$0xff]
      %v415 = vld [vmem:[%s2 + $0x80] sm:$0xff]
      %v416 = vld [vmem:[%s2 + $0x88] sm:$0xff]
      %v417 = vld [vmem:[%s2 + $0x90] sm:$0xff]
      %v418 = vld [vmem:[%s2 + $0x98] sm:$0xff]
      %v419 = vld [vmem:[%s2 + $0xa0] sm:$0xff]
      %v420 = vld [vmem:[%s2 + $0xa8] sm:$0xff]
      %v421 = vld [vmem:[%s2 + $0xb0] sm:$0xff]
      %v422 = vld [vmem:[%s2 + $0xb8] sm:$0xff]
      %v423 = vld [vmem:[%s2 + $0xc0] sm:$0xff]
      %v424 = vld [vmem:[%s2 + $0xc8] sm:$0xff]
      %v425 = vld [vmem:[%s2 + $0xd0] sm:$0xff]
      %v426 = vld [vmem:[%s2 + $0xd8] sm:$0xff]
      %v427 = vld [vmem:[%s2 + $0xe0] sm:$0xff]
      %v428 = vld [vmem:[%s2 + $0xe8] sm:$0xff]
      %v429 = vld [vmem:[%s2 + $0xf0] sm:$0xff]
      %v430 = vld [vmem:[%s2 + $0xf8] sm:$0xff]
      %v431 = vld [vmem:[%s2 + $0x100] sm:$0xff]
      %v432 = vld [vmem:[%s2 + $0x108] sm:$0xff]
      %v433 = vld [vmem:[%s2 + $0x110] sm:$0xff]
      %v434 = vld [vmem:[%s2 + $0x118] sm:$0xff]
      %v435 = vld [vmem:[%s2 + $0x120] sm:$0xff]
      %v436 = vld [vmem:[%s2 + $0x128] sm:$0xff]
      %v437 = vld [vmem:[%s2 + $0x130] sm:$0xff]
      %v438 = vld [vmem:[%s2 + $0x138] sm:$0xff]
      %v439 = vld [vmem:[%s2 + $0x140] sm:$0xff]
      %v440 = vld [vmem:[%s2 + $0x148] sm:$0xff]
      %v441 = vld [vmem:[%s2 + $0x150] sm:$0xff]
      %v442 = vld [vmem:[%s2 + $0x158] sm:$0xff]
      %v443 = vld [vmem:[%s2 + $0x160] sm:$0xff]
      %v444 = vld [vmem:[%s2 + $0x168] sm:$0xff]
      %v445 = vld [vmem:[%s2 + $0x170] sm:$0xff]
      %v446 = vld [vmem:[%s2 + $0x178] sm:$0xff]
      %v447 = vld [vmem:[%s3] sm:$0x7]
      %v449 = vperm.slane %v447, 0
      %v450 = vperm.slane %v447, 1
      %v451 = vperm.slane %v447, 2
      %455 = vmatpush.msra.mxu0 %v444
      %456 = vmatpush.msra.mxu0 %v441
      %457 = vmatpush.msra.mxu0 %v438
      %458 = vmatpush.msra.mxu0 %v435
      %459 = vmatpush.msra.mxu0 %v432
      %460 = vmatpush.msra.mxu0 %v429
      %461 = vmatpush.msra.mxu0 %v426
      %462 = vmatpush.msra.mxu0 %v423
      %463 = vmatpush.msra.mxu0 %v420
      %464 = vmatpush.msra.mxu0 %v417
      %465 = vmatpush.msra.mxu0 %v414
      %466 = vmatpush.msra.mxu0 %v411
      %467 = vmatpush.msra.mxu0 %v408
      %468 = vmatpush.msra.mxu0 %v405
      %469 = vmatpush.msra.mxu0 %v402
      %470 = vmatpush.msra.mxu0 %v399
      %471 = vmatmul.f32.gmra.mxu0 %v391
      %v472 = vpop.f32.mrf.mxu0
      %v473 = vadd.f32 %v449, %v472
      %474 = vmatmul.f32.gmra.mxu0 %v392
      %v475 = vpop.f32.mrf.mxu0
      %v476 = vadd.f32 %v449, %v475
      %477 = vmatmul.f32.gmra.mxu0 %v393
      %v478 = vpop.f32.mrf.mxu0
      %v479 = vadd.f32 %v449, %v478
      %480 = vmatmul.f32.gmra.mxu0 %v394
      %v481 = vpop.f32.mrf.mxu0
      %v482 = vadd.f32 %v449, %v481
      %483 = vmatmul.f32.gmra.mxu0 %v395
      %v484 = vpop.f32.mrf.mxu0
      %v485 = vadd.f32 %v449, %v484
      %486 = vmatmul.f32.gmra.mxu0 %v396
      %v487 = vpop.f32.mrf.mxu0
      %v488 = vadd.f32 %v449, %v487
      %489 = vmatmul.f32.gmra.mxu0 %v397
      %v490 = vpop.f32.mrf.mxu0
      %v491 = vadd.f32 %v449, %v490
      %492 = vmatmul.f32.gmra.mxu0 %v398
      %v493 = vpop.f32.mrf.mxu0
      %v494 = vadd.f32 %v449, %v493
      %495 = vdwg.mxu0
      %496 = vmatpush.msra.mxu0 %v445
      %497 = vmatpush.msra.mxu0 %v442
      %498 = vmatpush.msra.mxu0 %v439
      %499 = vmatpush.msra.mxu0 %v436
      %500 = vmatpush.msra.mxu0 %v433
      %501 = vmatpush.msra.mxu0 %v430
      %502 = vmatpush.msra.mxu0 %v427
      %503 = vmatpush.msra.mxu0 %v424
      %504 = vmatpush.msra.mxu0 %v421
      %505 = vmatpush.msra.mxu0 %v418
      %506 = vmatpush.msra.mxu0 %v415
      %507 = vmatpush.msra.mxu0 %v412
      %508 = vmatpush.msra.mxu0 %v409
      %509 = vmatpush.msra.mxu0 %v406
      %510 = vmatpush.msra.mxu0 %v403
      %511 = vmatpush.msra.mxu0 %v400
      %512 = vmatmul.f32.gmra.mxu0 %v391
      %v513 = vpop.f32.mrf.mxu0
      %v514 = vadd.f32 %v450, %v513
      %515 = vmatmul.f32.gmra.mxu0 %v392
      %v516 = vpop.f32.mrf.mxu0
      %v517 = vadd.f32 %v450, %v516
      %518 = vmatmul.f32.gmra.mxu0 %v393
      %v519 = vpop.f32.mrf.mxu0
      %v520 = vadd.f32 %v450, %v519
      %521 = vmatmul.f32.gmra.mxu0 %v394
      %v522 = vpop.f32.mrf.mxu0
      %v523 = vadd.f32 %v450, %v522
      %524 = vmatmul.f32.gmra.mxu0 %v395
      %v525 = vpop.f32.mrf.mxu0
      %v526 = vadd.f32 %v450, %v525
      %527 = vmatmul.f32.gmra.mxu0 %v396
      %v528 = vpop.f32.mrf.mxu0
      %v529 = vadd.f32 %v450, %v528
      %530 = vmatmul.f32.gmra.mxu0 %v397
      %v531 = vpop.f32.mrf.mxu0
      %v532 = vadd.f32 %v450, %v531
      %533 = vmatmul.f32.gmra.mxu0 %v398
      %v534 = vpop.f32.mrf.mxu0
      %v535 = vadd.f32 %v450, %v534
      %536 = vdwg.mxu0
      %537 = vmatpush.msra.mxu0 %v446
      %538 = vmatpush.msra.mxu0 %v443
      %539 = vmatpush.msra.mxu0 %v440
      %540 = vmatpush.msra.mxu0 %v437
      %541 = vmatpush.msra.mxu0 %v434
      %542 = vmatpush.msra.mxu0 %v431
      %543 = vmatpush.msra.mxu0 %v428
      %544 = vmatpush.msra.mxu0 %v425
      %545 = vmatpush.msra.mxu0 %v422
      %546 = vmatpush.msra.mxu0 %v419
      %547 = vmatpush.msra.mxu0 %v416
      %548 = vmatpush.msra.mxu0 %v413
      %549 = vmatpush.msra.mxu0 %v410
      %550 = vmatpush.msra.mxu0 %v407
      %551 = vmatpush.msra.mxu0 %v404
      %552 = vmatpush.msra.mxu0 %v401
      %553 = vmatmul.f32.gmra.mxu0 %v391
      %v554 = vpop.f32.mrf.mxu0
      %v555 = vadd.f32 %v451, %v554
      %556 = vmatmul.f32.gmra.mxu0 %v392
      %v557 = vpop.f32.mrf.mxu0
      %v558 = vadd.f32 %v451, %v557
      %559 = vmatmul.f32.gmra.mxu0 %v393
      %v560 = vpop.f32.mrf.mxu0
      %v561 = vadd.f32 %v451, %v560
      %562 = vmatmul.f32.gmra.mxu0 %v394
      %v563 = vpop.f32.mrf.mxu0
      %v564 = vadd.f32 %v451, %v563
      %565 = vmatmul.f32.gmra.mxu0 %v395
      %v566 = vpop.f32.mrf.mxu0
      %v567 = vadd.f32 %v451, %v566
      %568 = vmatmul.f32.gmra.mxu0 %v396
      %v569 = vpop.f32.mrf.mxu0
      %v570 = vadd.f32 %v451, %v569
      %571 = vmatmul.f32.gmra.mxu0 %v397
      %v572 = vpop.f32.mrf.mxu0
      %v573 = vadd.f32 %v451, %v572
      %574 = vmatmul.f32.gmra.mxu0 %v398
      %v575 = vpop.f32.mrf.mxu0
      %v576 = vadd.f32 %v451, %v575
      %577 = vdwg.mxu0
      %578 = vst [vmem:[#allocation4] sm:$0xff] %v473
      %579 = vst [vmem:[#allocation4 + $0x8] sm:$0xff] %v514
      %580 = vst [vmem:[#allocation4 + $0x10] sm:$0xff] %v555
      %581 = vst [vmem:[#allocation4 + $0x18] sm:$0xff] %v476
      %582 = vst [vmem:[#allocation4 + $0x20] sm:$0xff] %v517
      %583 = vst [vmem:[#allocation4 + $0x28] sm:$0xff] %v558
      %584 = vst [vmem:[#allocation4 + $0x30] sm:$0xff] %v479
      %585 = vst [vmem:[#allocation4 + $0x38] sm:$0xff] %v520
      %586 = vst [vmem:[#allocation4 + $0x40] sm:$0xff] %v561
      %587 = vst [vmem:[#allocation4 + $0x48] sm:$0xff] %v482
      %588 = vst [vmem:[#allocation4 + $0x50] sm:$0xff] %v523
      %589 = vst [vmem:[#allocation4 + $0x58] sm:$0xff] %v564
      %590 = vst [vmem:[#allocation4 + $0x60] sm:$0xff] %v485
      %591 = vst [vmem:[#allocation4 + $0x68] sm:$0xff] %v526
      %592 = vst [vmem:[#allocation4 + $0x70] sm:$0xff] %v567
      %593 = vst [vmem:[#allocation4 + $0x78] sm:$0xff] %v488
      %594 = vst [vmem:[#allocation4 + $0x80] sm:$0xff] %v529
      %595 = vst [vmem:[#allocation4 + $0x88] sm:$0xff] %v570
      %596 = vst [vmem:[#allocation4 + $0x90] sm:$0xff] %v491
      %597 = vst [vmem:[#allocation4 + $0x98] sm:$0xff] %v532
      %598 = vst [vmem:[#allocation4 + $0xa0] sm:$0xff] %v573
      %599 = vst [vmem:[#allocation4 + $0xa8] sm:$0xff] %v494
      %600 = vst [vmem:[#allocation4 + $0xb0] sm:$0xff] %v535
      %601 = vst [vmem:[#allocation4 + $0xb8] sm:$0xff] %v576
      %v602 = vld [vmem:[%s4] sm:$0xff]
      %v603 = vld [vmem:[%s4 + $0x8] sm:$0xff]
      %v604 = vld [vmem:[%s4 + $0x10] sm:$0xff]
      %v605 = vld [vmem:[%s4 + $0x18] sm:$0xff]
      %v606 = vld [vmem:[%s4 + $0x20] sm:$0xff]
      %v607 = vld [vmem:[%s4 + $0x28] sm:$0xff]
      %v608 = vld [vmem:[%s4 + $0x30] sm:$0xff]
      %v609 = vld [vmem:[%s4 + $0x38] sm:$0xff]
      %v610 = vld [vmem:[%s4 + $0x40] sm:$0xff]
      %v611 = vld [vmem:[%s4 + $0x48] sm:$0xff]
      %v612 = vld [vmem:[%s4 + $0x50] sm:$0xff]
      %v613 = vld [vmem:[%s4 + $0x58] sm:$0xff]
      %v614 = vld [vmem:[%s4 + $0x60] sm:$0xff]
      %v615 = vld [vmem:[%s4 + $0x68] sm:$0xff]
      %v616 = vld [vmem:[%s4 + $0x70] sm:$0xff]
      %v617 = vld [vmem:[%s4 + $0x78] sm:$0xff]
      %v618 = vld [vmem:[%s4 + $0x80] sm:$0xff]
      %v619 = vld [vmem:[%s4 + $0x88] sm:$0xff]
      %v620 = vld [vmem:[%s4 + $0x90] sm:$0xff]
      %v621 = vld [vmem:[%s4 + $0x98] sm:$0xff]
      %v622 = vld [vmem:[%s4 + $0xa0] sm:$0xff]
      %v623 = vld [vmem:[%s4 + $0xa8] sm:$0xff]
      %v624 = vld [vmem:[%s4 + $0xb0] sm:$0xff]
      %v625 = vld [vmem:[%s4 + $0xb8] sm:$0xff]
      %v626 = vld [vmem:[%s4 + $0xc0] sm:$0xff]
      %v627 = vld [vmem:[%s4 + $0xc8] sm:$0xff]
      %v628 = vld [vmem:[%s4 + $0xd0] sm:$0xff]
      %v629 = vld [vmem:[%s4 + $0xd8] sm:$0xff]
      %v630 = vld [vmem:[%s4 + $0xe0] sm:$0xff]
      %v631 = vld [vmem:[%s4 + $0xe8] sm:$0xff]
      %v632 = vld [vmem:[%s4 + $0xf0] sm:$0xff]
      %v633 = vld [vmem:[%s4 + $0xf8] sm:$0xff]
      %v634 = vld [vmem:[%s4 + $0x100] sm:$0xff]
      %v635 = vld [vmem:[%s4 + $0x108] sm:$0xff]
      %v636 = vld [vmem:[%s4 + $0x110] sm:$0xff]
      %v637 = vld [vmem:[%s4 + $0x118] sm:$0xff]
      %v638 = vld [vmem:[%s4 + $0x120] sm:$0xff]
      %v639 = vld [vmem:[%s4 + $0x128] sm:$0xff]
      %v640 = vld [vmem:[%s4 + $0x130] sm:$0xff]
      %v641 = vld [vmem:[%s4 + $0x138] sm:$0xff]
      %v642 = vld [vmem:[%s4 + $0x140] sm:$0xff]
      %v643 = vld [vmem:[%s4 + $0x148] sm:$0xff]
      %v644 = vld [vmem:[%s4 + $0x150] sm:$0xff]
      %v645 = vld [vmem:[%s4 + $0x158] sm:$0xff]
      %v646 = vld [vmem:[%s4 + $0x160] sm:$0xff]
      %v647 = vld [vmem:[%s4 + $0x168] sm:$0xff]
      %v648 = vld [vmem:[%s4 + $0x170] sm:$0xff]
      %v649 = vld [vmem:[%s4 + $0x178] sm:$0xff]
      %v650 = vld [vmem:[%s5] sm:$0x1]
      %v651 = vld [vmem:[%s376] sm:$0xff]
      %s652 = smul.u32 %s26, 8
      %v653 = vld [vmem:[#allocation2] sm:$0xff]
      %v654 = vld [vmem:[#allocation3] sm:$0xff]
      %s655 = smul.u32 0, 3
      %s656 = smul.addr %s655, 8
      %s657 = scalar_lea.vmem [#allocation4], %s656
      %v658 = vld [vmem:[%s657] sm:$0xff]
      %v659 = vld [vmem:[%s657 + $0x8] sm:$0xff]
      %v660 = vld [vmem:[%s657 + $0x10] sm:$0xff]
      %661 = vmatpush.msra.mxu0 %v647
      %662 = vmatpush.msra.mxu0 %v644
      %663 = vmatpush.msra.mxu0 %v641
      %664 = vmatpush.msra.mxu0 %v638
      %665 = vmatpush.msra.mxu0 %v635
      %666 = vmatpush.msra.mxu0 %v632
      %667 = vmatpush.msra.mxu0 %v629
      %668 = vmatpush.msra.mxu0 %v626
      %669 = vmatpush.msra.mxu0 %v623
      %670 = vmatpush.msra.mxu0 %v620
      %671 = vmatpush.msra.mxu0 %v617
      %672 = vmatpush.msra.mxu0 %v614
      %673 = vmatpush.msra.mxu0 %v611
      %674 = vmatpush.msra.mxu0 %v608
      %675 = vmatpush.msra.mxu0 %v605
      %676 = vmatpush.msra.mxu0 %v602
      %677 = vmatmul.f32.gmra.mxu0 %v653
      %v678 = vpop.f32.mrf.mxu0
      %v679 = vadd.f32 0.0, %v678
      %680 = vdwg.mxu0
      %681 = vmatpush.msra.mxu0 %v648
      %682 = vmatpush.msra.mxu0 %v645
      %683 = vmatpush.msra.mxu0 %v642
      %684 = vmatpush.msra.mxu0 %v639
      %685 = vmatpush.msra.mxu0 %v636
      %686 = vmatpush.msra.mxu0 %v633
      %687 = vmatpush.msra.mxu0 %v630
      %688 = vmatpush.msra.mxu0 %v627
      %689 = vmatpush.msra.mxu0 %v624
      %690 = vmatpush.msra.mxu0 %v621
      %691 = vmatpush.msra.mxu0 %v618
      %692 = vmatpush.msra.mxu0 %v615
      %693 = vmatpush.msra.mxu0 %v612
      %694 = vmatpush.msra.mxu0 %v609
      %695 = vmatpush.msra.mxu0 %v606
      %696 = vmatpush.msra.mxu0 %v603
      %697 = vmatmul.f32.gmra.mxu0 %v653
      %v698 = vpop.f32.mrf.mxu0
      %v699 = vadd.f32 0.0, %v698
      %700 = vdwg.mxu0
      %701 = vmatpush.msra.mxu0 %v649
      %702 = vmatpush.msra.mxu0 %v646
      %703 = vmatpush.msra.mxu0 %v643
      %704 = vmatpush.msra.mxu0 %v640
      %705 = vmatpush.msra.mxu0 %v637
      %706 = vmatpush.msra.mxu0 %v634
      %707 = vmatpush.msra.mxu0 %v631
      %708 = vmatpush.msra.mxu0 %v628
      %709 = vmatpush.msra.mxu0 %v625
      %710 = vmatpush.msra.mxu0 %v622
      %711 = vmatpush.msra.mxu0 %v619
      %712 = vmatpush.msra.mxu0 %v616
      %713 = vmatpush.msra.mxu0 %v613
      %714 = vmatpush.msra.mxu0 %v610
      %715 = vmatpush.msra.mxu0 %v607
      %716 = vmatpush.msra.mxu0 %v604
      %717 = vmatmul.f32.gmra.mxu0 %v653
      %v718 = vpop.f32.mrf.mxu0
      %v719 = vadd.f32 0.0, %v718
      %720 = vdwg.mxu0
      %v721 = vadd.f32 %v658, %v679
      %v722 = vxor.u32 %v721, 2147483648
      %v723 = vmul.f32 %v722, 1.442695
      %v724 = vpow.pop %v723
      %v725 = vadd.f32 %v724, 1.0
      %v726 = vrcp.pop %v725
      %v727 = vmul.f32 %v725, %v726
      %v728 = vsub.f32 1.0, %v727
      %v729 = vmul.f32 %v726, %v728
      %v730 = vadd.f32 %v726, %v729
      %vm731 = vweird.f32 %v725
      %vm732 = vweird.f32 %v726
      %vm733 = vmor %vm731, %vm732
      %v734 = vsel %vm733, %v726, %v730
      %v735 = vand.u32 2147483647, %v725
      %vm736 = vcmp.eq.f32.partialorder %v735, 8.507059e+37
      %v737 = vand.u32 %v725, 2147483648
      %v738 = vor.u32 1.1754944e-38, %v737
      %v739 = vsel %vm736, %v738, %v734
      %v740 = vmul.f32 1.0, %v739
      %v741 = vadd.f32 %v659, %v699
      %v742 = vxor.u32 %v741, 2147483648
      %v743 = vmul.f32 %v742, 1.442695
      %v744 = vpow.pop %v743
      %v745 = vadd.f32 %v744, 1.0
      %v746 = vrcp.pop %v745
      %v747 = vmul.f32 %v745, %v746
      %v748 = vsub.f32 1.0, %v747
      %v749 = vmul.f32 %v746, %v748
      %v750 = vadd.f32 %v746, %v749
      %vm751 = vweird.f32 %v745
      %vm752 = vweird.f32 %v746
      %vm753 = vmor %vm751, %vm752
      %v754 = vsel %vm753, %v746, %v750
      %v755 = vand.u32 2147483647, %v745
      %vm756 = vcmp.eq.f32.partialorder %v755, 8.507059e+37
      %v757 = vand.u32 %v745, 2147483648
      %v758 = vor.u32 1.1754944e-38, %v757
      %v759 = vsel %vm756, %v758, %v754
      %v760 = vmul.f32 1.0, %v759
      %v762 = vperm.slane %v650, 0
      %v764 = vadd.f32 %v719, %v762
      %v765 = vmul.f32 %v740, %v764
      %v766 = vadd.f32 %v660, %v765
      %v767 = vtanh.pop %v766
      %v768 = vsub.f32 1.0, %v760
      %v769 = vmul.f32 %v768, %v767
      %v770 = vmul.f32 %v760, %v653
      %v771 = vadd.f32 %v769, %v770
      %v772 = vstv %s652
      %vm773 = vcmp.eq.s32.totalorder %v651, %v772
      %v774 = vsel %vm773, 1, 0
      %775 = vset.pattern.permute.xlu0 0
      %776 = vperm.xlu0 %775, %v774
      %v777 = vpop.permute.xlu0 %776
      %vm778 = vcmp.eq.s32.totalorder %v777, 1
      %v779 = vsel %vm778, %v771, %v654
      %s780 = smul.u32 1, 3
      %s781 = smul.addr %s780, 8
      %s782 = scalar_lea.vmem [#allocation4], %s781
      %v783 = vld [vmem:[%s782] sm:$0xff]
      %v784 = vld [vmem:[%s782 + $0x8] sm:$0xff]
      %v785 = vld [vmem:[%s782 + $0x10] sm:$0xff]
      %786 = vmatpush.msra.mxu0 %v647
      %787 = vmatpush.msra.mxu0 %v644
      %788 = vmatpush.msra.mxu0 %v641
      %789 = vmatpush.msra.mxu0 %v638
      %790 = vmatpush.msra.mxu0 %v635
      %791 = vmatpush.msra.mxu0 %v632
      %792 = vmatpush.msra.mxu0 %v629
      %793 = vmatpush.msra.mxu0 %v626
      %794 = vmatpush.msra.mxu0 %v623
      %795 = vmatpush.msra.mxu0 %v620
      %796 = vmatpush.msra.mxu0 %v617
      %797 = vmatpush.msra.mxu0 %v614
      %798 = vmatpush.msra.mxu0 %v611
      %799 = vmatpush.msra.mxu0 %v608
      %800 = vmatpush.msra.mxu0 %v605
      %801 = vmatpush.msra.mxu0 %v602
      %802 = vmatmul.f32.gmra.mxu0 %v771
      %v803 = vpop.f32.mrf.mxu0
      %v804 = vadd.f32 0.0, %v803
      %805 = vdwg.mxu0
      %806 = vmatpush.msra.mxu0 %v648
      %807 = vmatpush.msra.mxu0 %v645
      %808 = vmatpush.msra.mxu0 %v642
      %809 = vmatpush.msra.mxu0 %v639
      %810 = vmatpush.msra.mxu0 %v636
      %811 = vmatpush.msra.mxu0 %v633
      %812 = vmatpush.msra.mxu0 %v630
      %813 = vmatpush.msra.mxu0 %v627
      %814 = vmatpush.msra.mxu0 %v624
      %815 = vmatpush.msra.mxu0 %v621
      %816 = vmatpush.msra.mxu0 %v618
      %817 = vmatpush.msra.mxu0 %v615
      %818 = vmatpush.msra.mxu0 %v612
      %819 = vmatpush.msra.mxu0 %v609
      %820 = vmatpush.msra.mxu0 %v606
      %821 = vmatpush.msra.mxu0 %v603
      %822 = vmatmul.f32.gmra.mxu0 %v771
      %v823 = vpop.f32.mrf.mxu0
      %v824 = vadd.f32 0.0, %v823
      %825 = vdwg.mxu0
      %826 = vmatpush.msra.mxu0 %v649
      %827 = vmatpush.msra.mxu0 %v646
      %828 = vmatpush.msra.mxu0 %v643
      %829 = vmatpush.msra.mxu0 %v640
      %830 = vmatpush.msra.mxu0 %v637
      %831 = vmatpush.msra.mxu0 %v634
      %832 = vmatpush.msra.mxu0 %v631
      %833 = vmatpush.msra.mxu0 %v628
      %834 = vmatpush.msra.mxu0 %v625
      %835 = vmatpush.msra.mxu0 %v622
      %836 = vmatpush.msra.mxu0 %v619
      %837 = vmatpush.msra.mxu0 %v616
      %838 = vmatpush.msra.mxu0 %v613
      %839 = vmatpush.msra.mxu0 %v610
      %840 = vmatpush.msra.mxu0 %v607
      %841 = vmatpush.msra.mxu0 %v604
      %842 = vmatmul.f32.gmra.mxu0 %v771
      %v843 = vpop.f32.mrf.mxu0
      %v844 = vadd.f32 0.0, %v843
      %845 = vdwg.mxu0
      %v846 = vadd.f32 %v783, %v804
      %v847 = vxor.u32 %v846, 2147483648
      %v848 = vmul.f32 %v847, 1.442695
      %v849 = vpow.pop %v848
      %v850 = vadd.f32 %v849, 1.0
      %v851 = vrcp.pop %v850
      %v852 = vmul.f32 %v850, %v851
      %v853 = vsub.f32 1.0, %v852
      %v854 = vmul.f32 %v851, %v853
      %v855 = vadd.f32 %v851, %v854
      %vm856 = vweird.f32 %v850
      %vm857 = vweird.f32 %v851
      %vm858 = vmor %vm856, %vm857
      %v859 = vsel %vm858, %v851, %v855
      %v860 = vand.u32 2147483647, %v850
      %vm861 = vcmp.eq.f32.partialorder %v860, 8.507059e+37
      %v862 = vand.u32 %v850, 2147483648
      %v863 = vor.u32 1.1754944e-38, %v862
      %v864 = vsel %vm861, %v863, %v859
      %v865 = vmul.f32 1.0, %v864
      %v866 = vadd.f32 %v784, %v824
      %v867 = vxor.u32 %v866, 2147483648
      %v868 = vmul.f32 %v867, 1.442695
      %v869 = vpow.pop %v868
      %v870 = vadd.f32 %v869, 1.0
      %v871 = vrcp.pop %v870
      %v872 = vmul.f32 %v870, %v871
      %v873 = vsub.f32 1.0, %v872
      %v874 = vmul.f32 %v871, %v873
      %v875 = vadd.f32 %v871, %v874
      %vm876 = vweird.f32 %v870
      %vm877 = vweird.f32 %v871
      %vm878 = vmor %vm876, %vm877
      %v879 = vsel %vm878, %v871, %v875
      %v880 = vand.u32 2147483647, %v870
      %vm881 = vcmp.eq.f32.partialorder %v880, 8.507059e+37
      %v882 = vand.u32 %v870, 2147483648
      %v883 = vor.u32 1.1754944e-38, %v882
      %v884 = vsel %vm881, %v883, %v879
      %v885 = vmul.f32 1.0, %v884
      %v886 = vadd.f32 %v844, %v762
      %v887 = vmul.f32 %v865, %v886
      %v888 = vadd.f32 %v785, %v887
      %v889 = vtanh.pop %v888
      %v890 = vsub.f32 1.0, %v885
      %v891 = vmul.f32 %v890, %v889
      %v892 = vmul.f32 %v885, %v771
      %v893 = vadd.f32 %v891, %v892
      %s894 = sadd.s32 %s652, 1
      %v895 = vstv %s894
      %vm896 = vcmp.eq.s32.totalorder %v651, %v895
      %v897 = vsel %vm896, 1, 0
      %898 = vset.pattern.permute.xlu0 0
      %899 = vperm.xlu0 %898, %v897
      %v900 = vpop.permute.xlu0 %899
      %vm901 = vcmp.eq.s32.totalorder %v900, 1
      %v902 = vsel %vm901, %v893, %v779
      %s903 = smul.u32 2, 3
      %s904 = smul.addr %s903, 8
      %s905 = scalar_lea.vmem [#allocation4], %s904
      %v906 = vld [vmem:[%s905] sm:$0xff]
      %v907 = vld [vmem:[%s905 + $0x8] sm:$0xff]
      %v908 = vld [vmem:[%s905 + $0x10] sm:$0xff]
      %909 = vmatpush.msra.mxu0 %v647
      %910 = vmatpush.msra.mxu0 %v644
      %911 = vmatpush.msra.mxu0 %v641
      %912 = vmatpush.msra.mxu0 %v638
      %913 = vmatpush.msra.mxu0 %v635
      %914 = vmatpush.msra.mxu0 %v632
      %915 = vmatpush.msra.mxu0 %v629
      %916 = vmatpush.msra.mxu0 %v626
      %917 = vmatpush.msra.mxu0 %v623
      %918 = vmatpush.msra.mxu0 %v620
      %919 = vmatpush.msra.mxu0 %v617
      %920 = vmatpush.msra.mxu0 %v614
      %921 = vmatpush.msra.mxu0 %v611
      %922 = vmatpush.msra.mxu0 %v608
      %923 = vmatpush.msra.mxu0 %v605
      %924 = vmatpush.msra.mxu0 %v602
      %925 = vmatmul.f32.gmra.mxu0 %v893
      %v926 = vpop.f32.mrf.mxu0
      %v927 = vadd.f32 0.0, %v926
      %928 = vdwg.mxu0
      %929 = vmatpush.msra.mxu0 %v648
      %930 = vmatpush.msra.mxu0 %v645
      %931 = vmatpush.msra.mxu0 %v642
      %932 = vmatpush.msra.mxu0 %v639
      %933 = vmatpush.msra.mxu0 %v636
      %934 = vmatpush.msra.mxu0 %v633
      %935 = vmatpush.msra.mxu0 %v630
      %936 = vmatpush.msra.mxu0 %v627
      %937 = vmatpush.msra.mxu0 %v624
      %938 = vmatpush.msra.mxu0 %v621
      %939 = vmatpush.msra.mxu0 %v618
      %940 = vmatpush.msra.mxu0 %v615
      %941 = vmatpush.msra.mxu0 %v612
      %942 = vmatpush.msra.mxu0 %v609
      %943 = vmatpush.msra.mxu0 %v606
      %944 = vmatpush.msra.mxu0 %v603
      %945 = vmatmul.f32.gmra.mxu0 %v893
      %v946 = vpop.f32.mrf.mxu0
      %v947 = vadd.f32 0.0, %v946
      %948 = vdwg.mxu0
      %949 = vmatpush.msra.mxu0 %v649
      %950 = vmatpush.msra.mxu0 %v646
      %951 = vmatpush.msra.mxu0 %v643
      %952 = vmatpush.msra.mxu0 %v640
      %953 = vmatpush.msra.mxu0 %v637
      %954 = vmatpush.msra.mxu0 %v634
      %955 = vmatpush.msra.mxu0 %v631
      %956 = vmatpush.msra.mxu0 %v628
      %957 = vmatpush.msra.mxu0 %v625
      %958 = vmatpush.msra.mxu0 %v622
      %959 = vmatpush.msra.mxu0 %v619
      %960 = vmatpush.msra.mxu0 %v616
      %961 = vmatpush.msra.mxu0 %v613
      %962 = vmatpush.msra.mxu0 %v610
      %963 = vmatpush.msra.mxu0 %v607
      %964 = vmatpush.msra.mxu0 %v604
      %965 = vmatmul.f32.gmra.mxu0 %v893
      %v966 = vpop.f32.mrf.mxu0
      %v967 = vadd.f32 0.0, %v966
      %968 = vdwg.mxu0
      %v969 = vadd.f32 %v906, %v927
      %v970 = vxor.u32 %v969, 2147483648
      %v971 = vmul.f32 %v970, 1.442695
      %v972 = vpow.pop %v971
      %v973 = vadd.f32 %v972, 1.0
      %v974 = vrcp.pop %v973
      %v975 = vmul.f32 %v973, %v974
      %v976 = vsub.f32 1.0, %v975
      %v977 = vmul.f32 %v974, %v976
      %v978 = vadd.f32 %v974, %v977
      %vm979 = vweird.f32 %v973
      %vm980 = vweird.f32 %v974
      %vm981 = vmor %vm979, %vm980
      %v982 = vsel %vm981, %v974, %v978
      %v983 = vand.u32 2147483647, %v973
      %vm984 = vcmp.eq.f32.partialorder %v983, 8.507059e+37
      %v985 = vand.u32 %v973, 2147483648
      %v986 = vor.u32 1.1754944e-38, %v985
      %v987 = vsel %vm984, %v986, %v982
      %v988 = vmul.f32 1.0, %v987
      %v989 = vadd.f32 %v907, %v947
      %v990 = vxor.u32 %v989, 2147483648
      %v991 = vmul.f32 %v990, 1.442695
      %v992 = vpow.pop %v991
      %v993 = vadd.f32 %v992, 1.0
      %v994 = vrcp.pop %v993
      %v995 = vmul.f32 %v993, %v994
      %v996 = vsub.f32 1.0, %v995
      %v997 = vmul.f32 %v994, %v996
      %v998 = vadd.f32 %v994, %v997
      %vm999 = vweird.f32 %v993
      %vm1000 = vweird.f32 %v994
      %vm1001 = vmor %vm999, %vm1000
      %v1002 = vsel %vm1001, %v994, %v998
      %v1003 = vand.u32 2147483647, %v993
      %vm1004 = vcmp.eq.f32.partialorder %v1003, 8.507059e+37
      %v1005 = vand.u32 %v993, 2147483648
      %v1006 = vor.u32 1.1754944e-38, %v1005
      %v1007 = vsel %vm1004, %v1006, %v1002
      %v1008 = vmul.f32 1.0, %v1007
      %v1009 = vadd.f32 %v967, %v762
      %v1010 = vmul.f32 %v988, %v1009
      %v1011 = vadd.f32 %v908, %v1010
      %v1012 = vtanh.pop %v1011
      %v1013 = vsub.f32 1.0, %v1008
      %v1014 = vmul.f32 %v1013, %v1012
      %v1015 = vmul.f32 %v1008, %v893
      %v1016 = vadd.f32 %v1014, %v1015
      %s1017 = sadd.s32 %s652, 2
      %v1018 = vstv %s1017
      %vm1019 = vcmp.eq.s32.totalorder %v651, %v1018
      %v1020 = vsel %vm1019, 1, 0
      %1021 = vset.pattern.permute.xlu0 0
      %1022 = vperm.xlu0 %1021, %v1020
      %v1023 = vpop.permute.xlu0 %1022
      %vm1024 = vcmp.eq.s32.totalorder %v1023, 1
      %v1025 = vsel %vm1024, %v1016, %v902
      %s1026 = smul.u32 3, 3
      %s1027 = smul.addr %s1026, 8
      %s1028 = scalar_lea.vmem [#allocation4], %s1027
      %v1029 = vld [vmem:[%s1028] sm:$0xff]
      %v1030 = vld [vmem:[%s1028 + $0x8] sm:$0xff]
      %v1031 = vld [vmem:[%s1028 + $0x10] sm:$0xff]
      %1032 = vmatpush.msra.mxu0 %v647
      %1033 = vmatpush.msra.mxu0 %v644
      %1034 = vmatpush.msra.mxu0 %v641
      %1035 = vmatpush.msra.mxu0 %v638
      %1036 = vmatpush.msra.mxu0 %v635
      %1037 = vmatpush.msra.mxu0 %v632
      %1038 = vmatpush.msra.mxu0 %v629
      %1039 = vmatpush.msra.mxu0 %v626
      %1040 = vmatpush.msra.mxu0 %v623
      %1041 = vmatpush.msra.mxu0 %v620
      %1042 = vmatpush.msra.mxu0 %v617
      %1043 = vmatpush.msra.mxu0 %v614
      %1044 = vmatpush.msra.mxu0 %v611
      %1045 = vmatpush.msra.mxu0 %v608
      %1046 = vmatpush.msra.mxu0 %v605
      %1047 = vmatpush.msra.mxu0 %v602
      %1048 = vmatmul.f32.gmra.mxu0 %v1016
      %v1049 = vpop.f32.mrf.mxu0
      %v1050 = vadd.f32 0.0, %v1049
      %1051 = vdwg.mxu0
      %1052 = vmatpush.msra.mxu0 %v648
      %1053 = vmatpush.msra.mxu0 %v645
      %1054 = vmatpush.msra.mxu0 %v642
      %1055 = vmatpush.msra.mxu0 %v639
      %1056 = vmatpush.msra.mxu0 %v636
      %1057 = vmatpush.msra.mxu0 %v633
      %1058 = vmatpush.msra.mxu0 %v630
      %1059 = vmatpush.msra.mxu0 %v627
      %1060 = vmatpush.msra.mxu0 %v624
      %1061 = vmatpush.msra.mxu0 %v621
      %1062 = vmatpush.msra.mxu0 %v618
      %1063 = vmatpush.msra.mxu0 %v615
      %1064 = vmatpush.msra.mxu0 %v612
      %1065 = vmatpush.msra.mxu0 %v609
      %1066 = vmatpush.msra.mxu0 %v606
      %1067 = vmatpush.msra.mxu0 %v603
      %1068 = vmatmul.f32.gmra.mxu0 %v1016
      %v1069 = vpop.f32.mrf.mxu0
      %v1070 = vadd.f32 0.0, %v1069
      %1071 = vdwg.mxu0
      %1072 = vmatpush.msra.mxu0 %v649
      %1073 = vmatpush.msra.mxu0 %v646
      %1074 = vmatpush.msra.mxu0 %v643
      %1075 = vmatpush.msra.mxu0 %v640
      %1076 = vmatpush.msra.mxu0 %v637
      %1077 = vmatpush.msra.mxu0 %v634
      %1078 = vmatpush.msra.mxu0 %v631
      %1079 = vmatpush.msra.mxu0 %v628
      %1080 = vmatpush.msra.mxu0 %v625
      %1081 = vmatpush.msra.mxu0 %v622
      %1082 = vmatpush.msra.mxu0 %v619
      %1083 = vmatpush.msra.mxu0 %v616
      %1084 = vmatpush.msra.mxu0 %v613
      %1085 = vmatpush.msra.mxu0 %v610
      %1086 = vmatpush.msra.mxu0 %v607
      %1087 = vmatpush.msra.mxu0 %v604
      %1088 = vmatmul.f32.gmra.mxu0 %v1016
      %v1089 = vpop.f32.mrf.mxu0
      %v1090 = vadd.f32 0.0, %v1089
      %1091 = vdwg.mxu0
      %v1092 = vadd.f32 %v1029, %v1050
      %v1093 = vxor.u32 %v1092, 2147483648
      %v1094 = vmul.f32 %v1093, 1.442695
      %v1095 = vpow.pop %v1094
      %v1096 = vadd.f32 %v1095, 1.0
      %v1097 = vrcp.pop %v1096
      %v1098 = vmul.f32 %v1096, %v1097
      %v1099 = vsub.f32 1.0, %v1098
      %v1100 = vmul.f32 %v1097, %v1099
      %v1101 = vadd.f32 %v1097, %v1100
      %vm1102 = vweird.f32 %v1096
      %vm1103 = vweird.f32 %v1097
      %vm1104 = vmor %vm1102, %vm1103
      %v1105 = vsel %vm1104, %v1097, %v1101
      %v1106 = vand.u32 2147483647, %v1096
      %vm1107 = vcmp.eq.f32.partialorder %v1106, 8.507059e+37
      %v1108 = vand.u32 %v1096, 2147483648
      %v1109 = vor.u32 1.1754944e-38, %v1108
      %v1110 = vsel %vm1107, %v1109, %v1105
      %v1111 = vmul.f32 1.0, %v1110
      %v1112 = vadd.f32 %v1030, %v1070
      %v1113 = vxor.u32 %v1112, 2147483648
      %v1114 = vmul.f32 %v1113, 1.442695
      %v1115 = vpow.pop %v1114
      %v1116 = vadd.f32 %v1115, 1.0
      %v1117 = vrcp.pop %v1116
      %v1118 = vmul.f32 %v1116, %v1117
      %v1119 = vsub.f32 1.0, %v1118
      %v1120 = vmul.f32 %v1117, %v1119
      %v1121 = vadd.f32 %v1117, %v1120
      %vm1122 = vweird.f32 %v1116
      %vm1123 = vweird.f32 %v1117
      %vm1124 = vmor %vm1122, %vm1123
      %v1125 = vsel %vm1124, %v1117, %v1121
      %v1126 = vand.u32 2147483647, %v1116
      %vm1127 = vcmp.eq.f32.partialorder %v1126, 8.507059e+37
      %v1128 = vand.u32 %v1116, 2147483648
      %v1129 = vor.u32 1.1754944e-38, %v1128
      %v1130 = vsel %vm1127, %v1129, %v1125
      %v1131 = vmul.f32 1.0, %v1130
      %v1132 = vadd.f32 %v1090, %v762
      %v1133 = vmul.f32 %v1111, %v1132
      %v1134 = vadd.f32 %v1031, %v1133
      %v1135 = vtanh.pop %v1134
      %v1136 = vsub.f32 1.0, %v1131
      %v1137 = vmul.f32 %v1136, %v1135
      %v1138 = vmul.f32 %v1131, %v1016
      %v1139 = vadd.f32 %v1137, %v1138
      %s1140 = sadd.s32 %s652, 3
      %v1141 = vstv %s1140
      %vm1142 = vcmp.eq.s32.totalorder %v651, %v1141
      %v1143 = vsel %vm1142, 1, 0
      %1144 = vset.pattern.permute.xlu0 0
      %1145 = vperm.xlu0 %1144, %v1143
      %v1146 = vpop.permute.xlu0 %1145
      %vm1147 = vcmp.eq.s32.totalorder %v1146, 1
      %v1148 = vsel %vm1147, %v1139, %v1025
      %s1149 = smul.u32 4, 3
      %s1150 = smul.addr %s1149, 8
      %s1151 = scalar_lea.vmem [#allocation4], %s1150
      %v1152 = vld [vmem:[%s1151] sm:$0xff]
      %v1153 = vld [vmem:[%s1151 + $0x8] sm:$0xff]
      %v1154 = vld [vmem:[%s1151 + $0x10] sm:$0xff]
      %1155 = vmatpush.msra.mxu0 %v647
      %1156 = vmatpush.msra.mxu0 %v644
      %1157 = vmatpush.msra.mxu0 %v641
      %1158 = vmatpush.msra.mxu0 %v638
      %1159 = vmatpush.msra.mxu0 %v635
      %1160 = vmatpush.msra.mxu0 %v632
      %1161 = vmatpush.msra.mxu0 %v629
      %1162 = vmatpush.msra.mxu0 %v626
      %1163 = vmatpush.msra.mxu0 %v623
      %1164 = vmatpush.msra.mxu0 %v620
      %1165 = vmatpush.msra.mxu0 %v617
      %1166 = vmatpush.msra.mxu0 %v614
      %1167 = vmatpush.msra.mxu0 %v611
      %1168 = vmatpush.msra.mxu0 %v608
      %1169 = vmatpush.msra.mxu0 %v605
      %1170 = vmatpush.msra.mxu0 %v602
      %1171 = vmatmul.f32.gmra.mxu0 %v1139
      %v1172 = vpop.f32.mrf.mxu0
      %v1173 = vadd.f32 0.0, %v1172
      %1174 = vdwg.mxu0
      %1175 = vmatpush.msra.mxu0 %v648
      %1176 = vmatpush.msra.mxu0 %v645
      %1177 = vmatpush.msra.mxu0 %v642
      %1178 = vmatpush.msra.mxu0 %v639
      %1179 = vmatpush.msra.mxu0 %v636
      %1180 = vmatpush.msra.mxu0 %v633
      %1181 = vmatpush.msra.mxu0 %v630
      %1182 = vmatpush.msra.mxu0 %v627
      %1183 = vmatpush.msra.mxu0 %v624
      %1184 = vmatpush.msra.mxu0 %v621
      %1185 = vmatpush.msra.mxu0 %v618
      %1186 = vmatpush.msra.mxu0 %v615
      %1187 = vmatpush.msra.mxu0 %v612
      %1188 = vmatpush.msra.mxu0 %v609
      %1189 = vmatpush.msra.mxu0 %v606
      %1190 = vmatpush.msra.mxu0 %v603
      %1191 = vmatmul.f32.gmra.mxu0 %v1139
      %v1192 = vpop.f32.mrf.mxu0
      %v1193 = vadd.f32 0.0, %v1192
      %1194 = vdwg.mxu0
      %1195 = vmatpush.msra.mxu0 %v649
      %1196 = vmatpush.msra.mxu0 %v646
      %1197 = vmatpush.msra.mxu0 %v643
      %1198 = vmatpush.msra.mxu0 %v640
      %1199 = vmatpush.msra.mxu0 %v637
      %1200 = vmatpush.msra.mxu0 %v634
      %1201 = vmatpush.msra.mxu0 %v631
      %1202 = vmatpush.msra.mxu0 %v628
      %1203 = vmatpush.msra.mxu0 %v625
      %1204 = vmatpush.msra.mxu0 %v622
      %1205 = vmatpush.msra.mxu0 %v619
      %1206 = vmatpush.msra.mxu0 %v616
      %1207 = vmatpush.msra.mxu0 %v613
      %1208 = vmatpush.msra.mxu0 %v610
      %1209 = vmatpush.msra.mxu0 %v607
      %1210 = vmatpush.msra.mxu0 %v604
      %1211 = vmatmul.f32.gmra.mxu0 %v1139
      %v1212 = vpop.f32.mrf.mxu0
      %v1213 = vadd.f32 0.0, %v1212
      %1214 = vdwg.mxu0
      %v1215 = vadd.f32 %v1152, %v1173
      %v1216 = vxor.u32 %v1215, 2147483648
      %v1217 = vmul.f32 %v1216, 1.442695
      %v1218 = vpow.pop %v1217
      %v1219 = vadd.f32 %v1218, 1.0
      %v1220 = vrcp.pop %v1219
      %v1221 = vmul.f32 %v1219, %v1220
      %v1222 = vsub.f32 1.0, %v1221
      %v1223 = vmul.f32 %v1220, %v1222
      %v1224 = vadd.f32 %v1220, %v1223
      %vm1225 = vweird.f32 %v1219
      %vm1226 = vweird.f32 %v1220
      %vm1227 = vmor %vm1225, %vm1226
      %v1228 = vsel %vm1227, %v1220, %v1224
      %v1229 = vand.u32 2147483647, %v1219
      %vm1230 = vcmp.eq.f32.partialorder %v1229, 8.507059e+37
      %v1231 = vand.u32 %v1219, 2147483648
      %v1232 = vor.u32 1.1754944e-38, %v1231
      %v1233 = vsel %vm1230, %v1232, %v1228
      %v1234 = vmul.f32 1.0, %v1233
      %v1235 = vadd.f32 %v1153, %v1193
      %v1236 = vxor.u32 %v1235, 2147483648
      %v1237 = vmul.f32 %v1236, 1.442695
      %v1238 = vpow.pop %v1237
      %v1239 = vadd.f32 %v1238, 1.0
      %v1240 = vrcp.pop %v1239
      %v1241 = vmul.f32 %v1239, %v1240
      %v1242 = vsub.f32 1.0, %v1241
      %v1243 = vmul.f32 %v1240, %v1242
      %v1244 = vadd.f32 %v1240, %v1243
      %vm1245 = vweird.f32 %v1239
      %vm1246 = vweird.f32 %v1240
      %vm1247 = vmor %vm1245, %vm1246
      %v1248 = vsel %vm1247, %v1240, %v1244
      %v1249 = vand.u32 2147483647, %v1239
      %vm1250 = vcmp.eq.f32.partialorder %v1249, 8.507059e+37
      %v1251 = vand.u32 %v1239, 2147483648
      %v1252 = vor.u32 1.1754944e-38, %v1251
      %v1253 = vsel %vm1250, %v1252, %v1248
      %v1254 = vmul.f32 1.0, %v1253
      %v1255 = vadd.f32 %v1213, %v762
      %v1256 = vmul.f32 %v1234, %v1255
      %v1257 = vadd.f32 %v1154, %v1256
      %v1258 = vtanh.pop %v1257
      %v1259 = vsub.f32 1.0, %v1254
      %v1260 = vmul.f32 %v1259, %v1258
      %v1261 = vmul.f32 %v1254, %v1139
      %v1262 = vadd.f32 %v1260, %v1261
      %s1263 = sadd.s32 %s652, 4
      %v1264 = vstv %s1263
      %vm1265 = vcmp.eq.s32.totalorder %v651, %v1264
      %v1266 = vsel %vm1265, 1, 0
      %1267 = vset.pattern.permute.xlu0 0
      %1268 = vperm.xlu0 %1267, %v1266
      %v1269 = vpop.permute.xlu0 %1268
      %vm1270 = vcmp.eq.s32.totalorder %v1269, 1
      %v1271 = vsel %vm1270, %v1262, %v1148
      %s1272 = smul.u32 5, 3
      %s1273 = smul.addr %s1272, 8
      %s1274 = scalar_lea.vmem [#allocation4], %s1273
      %v1275 = vld [vmem:[%s1274] sm:$0xff]
      %v1276 = vld [vmem:[%s1274 + $0x8] sm:$0xff]
      %v1277 = vld [vmem:[%s1274 + $0x10] sm:$0xff]
      %1278 = vmatpush.msra.mxu0 %v647
      %1279 = vmatpush.msra.mxu0 %v644
      %1280 = vmatpush.msra.mxu0 %v641
      %1281 = vmatpush.msra.mxu0 %v638
      %1282 = vmatpush.msra.mxu0 %v635
      %1283 = vmatpush.msra.mxu0 %v632
      %1284 = vmatpush.msra.mxu0 %v629
      %1285 = vmatpush.msra.mxu0 %v626
      %1286 = vmatpush.msra.mxu0 %v623
      %1287 = vmatpush.msra.mxu0 %v620
      %1288 = vmatpush.msra.mxu0 %v617
      %1289 = vmatpush.msra.mxu0 %v614
      %1290 = vmatpush.msra.mxu0 %v611
      %1291 = vmatpush.msra.mxu0 %v608
      %1292 = vmatpush.msra.mxu0 %v605
      %1293 = vmatpush.msra.mxu0 %v602
      %1294 = vmatmul.f32.gmra.mxu0 %v1262
      %v1295 = vpop.f32.mrf.mxu0
      %v1296 = vadd.f32 0.0, %v1295
      %1297 = vdwg.mxu0
      %1298 = vmatpush.msra.mxu0 %v648
      %1299 = vmatpush.msra.mxu0 %v645
      %1300 = vmatpush.msra.mxu0 %v642
      %1301 = vmatpush.msra.mxu0 %v639
      %1302 = vmatpush.msra.mxu0 %v636
      %1303 = vmatpush.msra.mxu0 %v633
      %1304 = vmatpush.msra.mxu0 %v630
      %1305 = vmatpush.msra.mxu0 %v627
      %1306 = vmatpush.msra.mxu0 %v624
      %1307 = vmatpush.msra.mxu0 %v621
      %1308 = vmatpush.msra.mxu0 %v618
      %1309 = vmatpush.msra.mxu0 %v615
      %1310 = vmatpush.msra.mxu0 %v612
      %1311 = vmatpush.msra.mxu0 %v609
      %1312 = vmatpush.msra.mxu0 %v606
      %1313 = vmatpush.msra.mxu0 %v603
      %1314 = vmatmul.f32.gmra.mxu0 %v1262
      %v1315 = vpop.f32.mrf.mxu0
      %v1316 = vadd.f32 0.0, %v1315
      %1317 = vdwg.mxu0
      %1318 = vmatpush.msra.mxu0 %v649
      %1319 = vmatpush.msra.mxu0 %v646
      %1320 = vmatpush.msra.mxu0 %v643
      %1321 = vmatpush.msra.mxu0 %v640
      %1322 = vmatpush.msra.mxu0 %v637
      %1323 = vmatpush.msra.mxu0 %v634
      %1324 = vmatpush.msra.mxu0 %v631
      %1325 = vmatpush.msra.mxu0 %v628
      %1326 = vmatpush.msra.mxu0 %v625
      %1327 = vmatpush.msra.mxu0 %v622
      %1328 = vmatpush.msra.mxu0 %v619
      %1329 = vmatpush.msra.mxu0 %v616
      %1330 = vmatpush.msra.mxu0 %v613
      %1331 = vmatpush.msra.mxu0 %v610
      %1332 = vmatpush.msra.mxu0 %v607
      %1333 = vmatpush.msra.mxu0 %v604
      %1334 = vmatmul.f32.gmra.mxu0 %v1262
      %v1335 = vpop.f32.mrf.mxu0
      %v1336 = vadd.f32 0.0, %v1335
      %1337 = vdwg.mxu0
      %v1338 = vadd.f32 %v1275, %v1296
      %v1339 = vxor.u32 %v1338, 2147483648
      %v1340 = vmul.f32 %v1339, 1.442695
      %v1341 = vpow.pop %v1340
      %v1342 = vadd.f32 %v1341, 1.0
      %v1343 = vrcp.pop %v1342
      %v1344 = vmul.f32 %v1342, %v1343
      %v1345 = vsub.f32 1.0, %v1344
      %v1346 = vmul.f32 %v1343, %v1345
      %v1347 = vadd.f32 %v1343, %v1346
      %vm1348 = vweird.f32 %v1342
      %vm1349 = vweird.f32 %v1343
      %vm1350 = vmor %vm1348, %vm1349
      %v1351 = vsel %vm1350, %v1343, %v1347
      %v1352 = vand.u32 2147483647, %v1342
      %vm1353 = vcmp.eq.f32.partialorder %v1352, 8.507059e+37
      %v1354 = vand.u32 %v1342, 2147483648
      %v1355 = vor.u32 1.1754944e-38, %v1354
      %v1356 = vsel %vm1353, %v1355, %v1351
      %v1357 = vmul.f32 1.0, %v1356
      %v1358 = vadd.f32 %v1276, %v1316
      %v1359 = vxor.u32 %v1358, 2147483648
      %v1360 = vmul.f32 %v1359, 1.442695
      %v1361 = vpow.pop %v1360
      %v1362 = vadd.f32 %v1361, 1.0
      %v1363 = vrcp.pop %v1362
      %v1364 = vmul.f32 %v1362, %v1363
      %v1365 = vsub.f32 1.0, %v1364
      %v1366 = vmul.f32 %v1363, %v1365
      %v1367 = vadd.f32 %v1363, %v1366
      %vm1368 = vweird.f32 %v1362
      %vm1369 = vweird.f32 %v1363
      %vm1370 = vmor %vm1368, %vm1369
      %v1371 = vsel %vm1370, %v1363, %v1367
      %v1372 = vand.u32 2147483647, %v1362
      %vm1373 = vcmp.eq.f32.partialorder %v1372, 8.507059e+37
      %v1374 = vand.u32 %v1362, 2147483648
      %v1375 = vor.u32 1.1754944e-38, %v1374
      %v1376 = vsel %vm1373, %v1375, %v1371
      %v1377 = vmul.f32 1.0, %v1376
      %v1378 = vadd.f32 %v1336, %v762
      %v1379 = vmul.f32 %v1357, %v1378
      %v1380 = vadd.f32 %v1277, %v1379
      %v1381 = vtanh.pop %v1380
      %v1382 = vsub.f32 1.0, %v1377
      %v1383 = vmul.f32 %v1382, %v1381
      %v1384 = vmul.f32 %v1377, %v1262
      %v1385 = vadd.f32 %v1383, %v1384
      %s1386 = sadd.s32 %s652, 5
      %v1387 = vstv %s1386
      %vm1388 = vcmp.eq.s32.totalorder %v651, %v1387
      %v1389 = vsel %vm1388, 1, 0
      %1390 = vset.pattern.permute.xlu0 0
      %1391 = vperm.xlu0 %1390, %v1389
      %v1392 = vpop.permute.xlu0 %1391
      %vm1393 = vcmp.eq.s32.totalorder %v1392, 1
      %v1394 = vsel %vm1393, %v1385, %v1271
      %s1395 = smul.u32 6, 3
      %s1396 = smul.addr %s1395, 8
      %s1397 = scalar_lea.vmem [#allocation4], %s1396
      %v1398 = vld [vmem:[%s1397] sm:$0xff]
      %v1399 = vld [vmem:[%s1397 + $0x8] sm:$0xff]
      %v1400 = vld [vmem:[%s1397 + $0x10] sm:$0xff]
      %1401 = vmatpush.msra.mxu0 %v647
      %1402 = vmatpush.msra.mxu0 %v644
      %1403 = vmatpush.msra.mxu0 %v641
      %1404 = vmatpush.msra.mxu0 %v638
      %1405 = vmatpush.msra.mxu0 %v635
      %1406 = vmatpush.msra.mxu0 %v632
      %1407 = vmatpush.msra.mxu0 %v629
      %1408 = vmatpush.msra.mxu0 %v626
      %1409 = vmatpush.msra.mxu0 %v623
      %1410 = vmatpush.msra.mxu0 %v620
      %1411 = vmatpush.msra.mxu0 %v617
      %1412 = vmatpush.msra.mxu0 %v614
      %1413 = vmatpush.msra.mxu0 %v611
      %1414 = vmatpush.msra.mxu0 %v608
      %1415 = vmatpush.msra.mxu0 %v605
      %1416 = vmatpush.msra.mxu0 %v602
      %1417 = vmatmul.f32.gmra.mxu0 %v1385
      %v1418 = vpop.f32.mrf.mxu0
      %v1419 = vadd.f32 0.0, %v1418
      %1420 = vdwg.mxu0
      %1421 = vmatpush.msra.mxu0 %v648
      %1422 = vmatpush.msra.mxu0 %v645
      %1423 = vmatpush.msra.mxu0 %v642
      %1424 = vmatpush.msra.mxu0 %v639
      %1425 = vmatpush.msra.mxu0 %v636
      %1426 = vmatpush.msra.mxu0 %v633
      %1427 = vmatpush.msra.mxu0 %v630
      %1428 = vmatpush.msra.mxu0 %v627
      %1429 = vmatpush.msra.mxu0 %v624
      %1430 = vmatpush.msra.mxu0 %v621
      %1431 = vmatpush.msra.mxu0 %v618
      %1432 = vmatpush.msra.mxu0 %v615
      %1433 = vmatpush.msra.mxu0 %v612
      %1434 = vmatpush.msra.mxu0 %v609
      %1435 = vmatpush.msra.mxu0 %v606
      %1436 = vmatpush.msra.mxu0 %v603
      %1437 = vmatmul.f32.gmra.mxu0 %v1385
      %v1438 = vpop.f32.mrf.mxu0
      %v1439 = vadd.f32 0.0, %v1438
      %1440 = vdwg.mxu0
      %1441 = vmatpush.msra.mxu0 %v649
      %1442 = vmatpush.msra.mxu0 %v646
      %1443 = vmatpush.msra.mxu0 %v643
      %1444 = vmatpush.msra.mxu0 %v640
      %1445 = vmatpush.msra.mxu0 %v637
      %1446 = vmatpush.msra.mxu0 %v634
      %1447 = vmatpush.msra.mxu0 %v631
      %1448 = vmatpush.msra.mxu0 %v628
      %1449 = vmatpush.msra.mxu0 %v625
      %1450 = vmatpush.msra.mxu0 %v622
      %1451 = vmatpush.msra.mxu0 %v619
      %1452 = vmatpush.msra.mxu0 %v616
      %1453 = vmatpush.msra.mxu0 %v613
      %1454 = vmatpush.msra.mxu0 %v610
      %1455 = vmatpush.msra.mxu0 %v607
      %1456 = vmatpush.msra.mxu0 %v604
      %1457 = vmatmul.f32.gmra.mxu0 %v1385
      %v1458 = vpop.f32.mrf.mxu0
      %v1459 = vadd.f32 0.0, %v1458
      %1460 = vdwg.mxu0
      %v1461 = vadd.f32 %v1398, %v1419
      %v1462 = vxor.u32 %v1461, 2147483648
      %v1463 = vmul.f32 %v1462, 1.442695
      %v1464 = vpow.pop %v1463
      %v1465 = vadd.f32 %v1464, 1.0
      %v1466 = vrcp.pop %v1465
      %v1467 = vmul.f32 %v1465, %v1466
      %v1468 = vsub.f32 1.0, %v1467
      %v1469 = vmul.f32 %v1466, %v1468
      %v1470 = vadd.f32 %v1466, %v1469
      %vm1471 = vweird.f32 %v1465
      %vm1472 = vweird.f32 %v1466
      %vm1473 = vmor %vm1471, %vm1472
      %v1474 = vsel %vm1473, %v1466, %v1470
      %v1475 = vand.u32 2147483647, %v1465
      %vm1476 = vcmp.eq.f32.partialorder %v1475, 8.507059e+37
      %v1477 = vand.u32 %v1465, 2147483648
      %v1478 = vor.u32 1.1754944e-38, %v1477
      %v1479 = vsel %vm1476, %v1478, %v1474
      %v1480 = vmul.f32 1.0, %v1479
      %v1481 = vadd.f32 %v1399, %v1439
      %v1482 = vxor.u32 %v1481, 2147483648
      %v1483 = vmul.f32 %v1482, 1.442695
      %v1484 = vpow.pop %v1483
      %v1485 = vadd.f32 %v1484, 1.0
      %v1486 = vrcp.pop %v1485
      %v1487 = vmul.f32 %v1485, %v1486
      %v1488 = vsub.f32 1.0, %v1487
      %v1489 = vmul.f32 %v1486, %v1488
      %v1490 = vadd.f32 %v1486, %v1489
      %vm1491 = vweird.f32 %v1485
      %vm1492 = vweird.f32 %v1486
      %vm1493 = vmor %vm1491, %vm1492
      %v1494 = vsel %vm1493, %v1486, %v1490
      %v1495 = vand.u32 2147483647, %v1485
      %vm1496 = vcmp.eq.f32.partialorder %v1495, 8.507059e+37
      %v1497 = vand.u32 %v1485, 2147483648
      %v1498 = vor.u32 1.1754944e-38, %v1497
      %v1499 = vsel %vm1496, %v1498, %v1494
      %v1500 = vmul.f32 1.0, %v1499
      %v1501 = vadd.f32 %v1459, %v762
      %v1502 = vmul.f32 %v1480, %v1501
      %v1503 = vadd.f32 %v1400, %v1502
      %v1504 = vtanh.pop %v1503
      %v1505 = vsub.f32 1.0, %v1500
      %v1506 = vmul.f32 %v1505, %v1504
      %v1507 = vmul.f32 %v1500, %v1385
      %v1508 = vadd.f32 %v1506, %v1507
      %s1509 = sadd.s32 %s652, 6
      %v1510 = vstv %s1509
      %vm1511 = vcmp.eq.s32.totalorder %v651, %v1510
      %v1512 = vsel %vm1511, 1, 0
      %1513 = vset.pattern.permute.xlu0 0
      %1514 = vperm.xlu0 %1513, %v1512
      %v1515 = vpop.permute.xlu0 %1514
      %vm1516 = vcmp.eq.s32.totalorder %v1515, 1
      %v1517 = vsel %vm1516, %v1508, %v1394
      %s1518 = smul.u32 7, 3
      %s1519 = smul.addr %s1518, 8
      %s1520 = scalar_lea.vmem [#allocation4], %s1519
      %v1521 = vld [vmem:[%s1520] sm:$0xff]
      %v1522 = vld [vmem:[%s1520 + $0x8] sm:$0xff]
      %v1523 = vld [vmem:[%s1520 + $0x10] sm:$0xff]
      %1524 = vmatpush.msra.mxu0 %v647
      %1525 = vmatpush.msra.mxu0 %v644
      %1526 = vmatpush.msra.mxu0 %v641
      %1527 = vmatpush.msra.mxu0 %v638
      %1528 = vmatpush.msra.mxu0 %v635
      %1529 = vmatpush.msra.mxu0 %v632
      %1530 = vmatpush.msra.mxu0 %v629
      %1531 = vmatpush.msra.mxu0 %v626
      %1532 = vmatpush.msra.mxu0 %v623
      %1533 = vmatpush.msra.mxu0 %v620
      %1534 = vmatpush.msra.mxu0 %v617
      %1535 = vmatpush.msra.mxu0 %v614
      %1536 = vmatpush.msra.mxu0 %v611
      %1537 = vmatpush.msra.mxu0 %v608
      %1538 = vmatpush.msra.mxu0 %v605
      %1539 = vmatpush.msra.mxu0 %v602
      %1540 = vmatmul.f32.gmra.mxu0 %v1508
      %v1541 = vpop.f32.mrf.mxu0
      %v1542 = vadd.f32 0.0, %v1541
      %1543 = vdwg.mxu0
      %1544 = vmatpush.msra.mxu0 %v648
      %1545 = vmatpush.msra.mxu0 %v645
      %1546 = vmatpush.msra.mxu0 %v642
      %1547 = vmatpush.msra.mxu0 %v639
      %1548 = vmatpush.msra.mxu0 %v636
      %1549 = vmatpush.msra.mxu0 %v633
      %1550 = vmatpush.msra.mxu0 %v630
      %1551 = vmatpush.msra.mxu0 %v627
      %1552 = vmatpush.msra.mxu0 %v624
      %1553 = vmatpush.msra.mxu0 %v621
      %1554 = vmatpush.msra.mxu0 %v618
      %1555 = vmatpush.msra.mxu0 %v615
      %1556 = vmatpush.msra.mxu0 %v612
      %1557 = vmatpush.msra.mxu0 %v609
      %1558 = vmatpush.msra.mxu0 %v606
      %1559 = vmatpush.msra.mxu0 %v603
      %1560 = vmatmul.f32.gmra.mxu0 %v1508
      %v1561 = vpop.f32.mrf.mxu0
      %v1562 = vadd.f32 0.0, %v1561
      %1563 = vdwg.mxu0
      %1564 = vmatpush.msra.mxu0 %v649
      %1565 = vmatpush.msra.mxu0 %v646
      %1566 = vmatpush.msra.mxu0 %v643
      %1567 = vmatpush.msra.mxu0 %v640
      %1568 = vmatpush.msra.mxu0 %v637
      %1569 = vmatpush.msra.mxu0 %v634
      %1570 = vmatpush.msra.mxu0 %v631
      %1571 = vmatpush.msra.mxu0 %v628
      %1572 = vmatpush.msra.mxu0 %v625
      %1573 = vmatpush.msra.mxu0 %v622
      %1574 = vmatpush.msra.mxu0 %v619
      %1575 = vmatpush.msra.mxu0 %v616
      %1576 = vmatpush.msra.mxu0 %v613
      %1577 = vmatpush.msra.mxu0 %v610
      %1578 = vmatpush.msra.mxu0 %v607
      %1579 = vmatpush.msra.mxu0 %v604
      %1580 = vmatmul.f32.gmra.mxu0 %v1508
      %v1581 = vpop.f32.mrf.mxu0
      %v1582 = vadd.f32 0.0, %v1581
      %1583 = vdwg.mxu0
      %v1584 = vadd.f32 %v1521, %v1542
      %v1585 = vxor.u32 %v1584, 2147483648
      %v1586 = vmul.f32 %v1585, 1.442695
      %v1587 = vpow.pop %v1586
      %v1588 = vadd.f32 %v1587, 1.0
      %v1589 = vrcp.pop %v1588
      %v1590 = vmul.f32 %v1588, %v1589
      %v1591 = vsub.f32 1.0, %v1590
      %v1592 = vmul.f32 %v1589, %v1591
      %v1593 = vadd.f32 %v1589, %v1592
      %vm1594 = vweird.f32 %v1588
      %vm1595 = vweird.f32 %v1589
      %vm1596 = vmor %vm1594, %vm1595
      %v1597 = vsel %vm1596, %v1589, %v1593
      %v1598 = vand.u32 2147483647, %v1588
      %vm1599 = vcmp.eq.f32.partialorder %v1598, 8.507059e+37
      %v1600 = vand.u32 %v1588, 2147483648
      %v1601 = vor.u32 1.1754944e-38, %v1600
      %v1602 = vsel %vm1599, %v1601, %v1597
      %v1603 = vmul.f32 1.0, %v1602
      %v1604 = vadd.f32 %v1522, %v1562
      %v1605 = vxor.u32 %v1604, 2147483648
      %v1606 = vmul.f32 %v1605, 1.442695
      %v1607 = vpow.pop %v1606
      %v1608 = vadd.f32 %v1607, 1.0
      %v1609 = vrcp.pop %v1608
      %v1610 = vmul.f32 %v1608, %v1609
      %v1611 = vsub.f32 1.0, %v1610
      %v1612 = vmul.f32 %v1609, %v1611
      %v1613 = vadd.f32 %v1609, %v1612
      %vm1614 = vweird.f32 %v1608
      %vm1615 = vweird.f32 %v1609
      %vm1616 = vmor %vm1614, %vm1615
      %v1617 = vsel %vm1616, %v1609, %v1613
      %v1618 = vand.u32 2147483647, %v1608
      %vm1619 = vcmp.eq.f32.partialorder %v1618, 8.507059e+37
      %v1620 = vand.u32 %v1608, 2147483648
      %v1621 = vor.u32 1.1754944e-38, %v1620
      %v1622 = vsel %vm1619, %v1621, %v1617
      %v1623 = vmul.f32 1.0, %v1622
      %v1624 = vadd.f32 %v1582, %v762
      %v1625 = vmul.f32 %v1603, %v1624
      %v1626 = vadd.f32 %v1523, %v1625
      %v1627 = vtanh.pop %v1626
      %v1628 = vsub.f32 1.0, %v1623
      %v1629 = vmul.f32 %v1628, %v1627
      %v1630 = vmul.f32 %v1623, %v1508
      %v1631 = vadd.f32 %v1629, %v1630
      %s1632 = sadd.s32 %s652, 7
      %v1633 = vstv %s1632
      %vm1634 = vcmp.eq.s32.totalorder %v651, %v1633
      %v1635 = vsel %vm1634, 1, 0
      %1636 = vset.pattern.permute.xlu0 0
      %1637 = vperm.xlu0 %1636, %v1635
      %v1638 = vpop.permute.xlu0 %1637
      %vm1639 = vcmp.eq.s32.totalorder %v1638, 1
      %v1640 = vsel %vm1639, %v1631, %v1517
      %1641 = vst [vmem:[#allocation2] sm:$0xff] %v1631
      %1642 = vst [vmem:[#allocation3] sm:$0xff] %v1640
      %p1643 = scmp.eq.s32.totalorder %s26, 1
      // Predicated region
      $region57: #{network_forward.1} parent=51 // pred_check
        %p1644 = pneg %p1643
      $region58: #{network_forward.1} parent=51 // pred_check_branch
        %1646 = sbr.rel (%p1644) target = $region60
      $region59: #{network_forward.1} parent=51 // pred_region
        %1647 = vst [vmem:[%s384] sm:$0xff] %v1640
        %v1648 = vld [vmem:[%s6] sm:$0xff]
        %v1649 = vld [vmem:[%s6 + $0x8] sm:$0xff]
        %v1650 = vld [vmem:[%s6 + $0x10] sm:$0xff]
        %v1651 = vld [vmem:[%s6 + $0x18] sm:$0xff]
        %v1652 = vld [vmem:[%s6 + $0x20] sm:$0xff]
        %v1653 = vld [vmem:[%s6 + $0x28] sm:$0xff]
        %v1654 = vld [vmem:[%s6 + $0x30] sm:$0xff]
        %v1655 = vld [vmem:[%s6 + $0x38] sm:$0xff]
        %v1656 = vld [vmem:[%s6 + $0x40] sm:$0xff]
        %v1657 = vld [vmem:[%s6 + $0x48] sm:$0xff]
        %v1658 = vld [vmem:[%s6 + $0x50] sm:$0xff]
        %v1659 = vld [vmem:[%s6 + $0x58] sm:$0xff]
        %v1660 = vld [vmem:[%s6 + $0x60] sm:$0xff]
        %v1661 = vld [vmem:[%s6 + $0x68] sm:$0xff]
        %v1662 = vld [vmem:[%s6 + $0x70] sm:$0xff]
        %v1663 = vld [vmem:[%s6 + $0x78] sm:$0xff]
        %v1664 = vld [vmem:[%s7] sm:$0x1]
        %v1666 = vperm.slane %v1664, 0
        %1668 = vmatpush.msra.mxu0 %v1663
        %1669 = vmatpush.msra.mxu0 %v1662
        %1670 = vmatpush.msra.mxu0 %v1661
        %1671 = vmatpush.msra.mxu0 %v1660
        %1672 = vmatpush.msra.mxu0 %v1659
        %1673 = vmatpush.msra.mxu0 %v1658
        %1674 = vmatpush.msra.mxu0 %v1657
        %1675 = vmatpush.msra.mxu0 %v1656
        %1676 = vmatpush.msra.mxu0 %v1655
        %1677 = vmatpush.msra.mxu0 %v1654
        %1678 = vmatpush.msra.mxu0 %v1653
        %1679 = vmatpush.msra.mxu0 %v1652
        %1680 = vmatpush.msra.mxu0 %v1651
        %1681 = vmatpush.msra.mxu0 %v1650
        %1682 = vmatpush.msra.mxu0 %v1649
        %1683 = vmatpush.msra.mxu0 %v1648
        %1684 = vmatmul.f32.gmra.mxu0 %v1640
        %v1685 = vpop.f32.mrf.mxu0
        %v1686 = vadd.f32 %v1666, %v1685
        %1687 = vdwg.mxu0
        %1688 = vst [vmem:[%s380] sm:$0xff] %v1686
      $region60: #{network_forward.1} parent=51 // pred_fallthru
        _
      %p1689 = scmp.lt.s32.totalorder %s25, 0
      %s1690 = scalar_select %p1689, %s25, 0
      %s1691 = smul.addr %s1690, 8
      %s1692 = scalar_lea.vmem %s8, %s1691
      %p1693 = scmp.lt.s32.totalorder %s25, 0
      %s1694 = scalar_select %p1693, %s25, 0
      %s1695 = smul.addr %s1694, 8
      %s1696 = scalar_lea.vmem %s9, %s1695
      // Predicated region
      $region61: #{network_forward.1} parent=51 // pred_check
        %p1697 = pneg %p231
      $region62: #{network_forward.1} parent=51 // pred_check_branch
        %1699 = sbr.rel (%p1697) target = $region64
      $region63: #{network_forward.1} parent=51 // pred_region
        _
      $region64: #{network_forward.1} parent=51 // pred_fallthru
        _
      // Predicated region
      $region65: #{network_forward.1} parent=51 // pred_check
        %p1700 = pneg %p257
      $region66: #{network_forward.1} parent=51 // pred_check_branch
        %1702 = sbr.rel (%p1700) target = $region68
      $region67: #{network_forward.1} parent=51 // pred_region
        _
      $region68: #{network_forward.1} parent=51 // pred_fallthru
        _
      // Predicated region
      $region69: #{network_forward.1} parent=51 // pred_check
        %p1703 = pneg %p231
      $region70: #{network_forward.1} parent=51 // pred_check_branch
        %1705 = sbr.rel (%p1703) target = $region72
      $region71: #{network_forward.1} parent=51 // pred_region
        %p1706 = scmp.lt.s32.totalorder %s25, 0
        %s1707 = scalar_select %p1706, %s25, 0
        %s1708 = smul.addr %s1707, 8
        %s1709 = scalar_lea.vmem %s8, %s1708
      $region72: #{network_forward.1} parent=51 // pred_fallthru
        _
      // Predicated region
      $region73: #{network_forward.1} parent=51 // pred_check
        %p1710 = pneg %p257
      $region74: #{network_forward.1} parent=51 // pred_check_branch
        %1712 = sbr.rel (%p1710) target = $region76
      $region75: #{network_forward.1} parent=51 // pred_region
        %p1713 = scmp.lt.s32.totalorder %s25, 0
        %s1714 = scalar_select %p1713, %s25, 0
        %s1715 = smul.addr %s1714, 8
        %s1716 = scalar_lea.vmem %s9, %s1715
      $region76: #{network_forward.1} parent=51 // pred_fallthru
        _
    $region52: #{network_forward.1} parent=5 // pred_fallthru
      _
    %p1717 = scmp.le.s32.totalorder 2, %s16
    // Predicated region
    $region77: #{network_forward.1} parent=5 // pred_check
      %p1718 = pneg %p1717
    $region78: #{network_forward.1} parent=5 // pred_check_branch
      %1720 = sbr.rel (%p1718) target = $region80
    $region79: #{network_forward.1} parent=5 // pred_region
      %s1721 = ssub.s32 %s16, 2
    $region80: #{network_forward.1} parent=5 // pred_fallthru
      _
  $region6: #{network_forward.1} parent=0 // loop_footer
    %s20 = sadd.s32 1, %s16
  $region7: #{network_forward.1} parent=0 // loop_footer_branch
    %15 = sbr.rel target = $region3
  $region8: #{network_forward.1} parent=0 // loop_exit
    _

</llo_original>
